<compile_context>
chip_gen: v6e
topology: v6e:2x2x1
jax: 0.10.0
libtpu: 0.0.40
codegen_flags: <defaults>
</compile_context>

<pallas_src>
import jax
import jax.numpy as jnp
from jax.experimental import pallas as pl
from jax.experimental.pallas import tpu as pltpu


LEAK = 0.2
BN_EPS = 1e-5


def _leaky_relu(x):
    return jnp.where(x >= 0, x, LEAK * x)


def _pick_tile(hw):
    """Largest pixel tile (multiple of 128) that evenly divides H*W; else one full tile."""
    for t in (2048, 1024, 512, 256, 128):
        if hw % t == 0:
            return t
    return hw  # full extent (last block dim == full array dim is always legal)


# ---------------------------------------------------------------------------
# Pass 1: partial BN statistics of h2 = W2 @ leaky(W1 @ x + b1)
# ---------------------------------------------------------------------------
def _stats_kernel(x_ref, w1_ref, b1_ref, w2_ref, sum_ref, sumsq_ref):
    # x_ref : (Cin, tP)      channels on sublanes, pixels on lanes
    # w1_ref: (ndf, Cin)   b1_ref: (ndf, 1)   w2_ref: (2*ndf, ndf)
    # sum_ref / sumsq_ref: (2*ndf, 1) per-tile partial stats
    x = x_ref[...]
    h1 = jnp.dot(w1_ref[...], x, preferred_element_type=jnp.float32) + b1_ref[...]
    h1 = _leaky_relu(h1)
    h2 = jnp.dot(w2_ref[...], h1, preferred_element_type=jnp.float32)   # (2*ndf, tP)
    # single traversal: sum and sum-of-squares (var = E[x^2] - E[x]^2 finished in JAX)
    sum_ref[...] = jnp.sum(h2, axis=1, keepdims=True)
    sumsq_ref[...] = jnp.sum(h2 * h2, axis=1, keepdims=True)


# ---------------------------------------------------------------------------
# Pass 2: h2 with BN folded into (scale*W2, shift), LeakyReLU, final 1x1 conv
# ---------------------------------------------------------------------------
def _out_kernel(x_ref, w1_ref, b1_ref, w2s_ref, shift_ref, w3_ref, o_ref):
    # w2s_ref : (2*ndf, ndf) = scale * W2   shift_ref: (2*ndf, 1) = beta - mean*scale
    # w3_ref  : (2*ndf, 1)                  o_ref    : (1, tP)  lane-dense output
    x = x_ref[...]
    h1 = _leaky_relu(
        jnp.dot(w1_ref[...], x, preferred_element_type=jnp.float32) + b1_ref[...])
    h2 = _leaky_relu(
        jnp.dot(w2s_ref[...], h1, preferred_element_type=jnp.float32) + shift_ref[...])
    # Final conv to a single output channel: VPU multiply + sublane (channel) reduction
    # instead of a 1-column MXU matmul.
    o_ref[...] = jnp.sum(w3_ref[...] * h2, axis=0, keepdims=True)


# ---------------------------------------------------------------------------
# Parameters (shapes match the PyTorch module, stored as (Cout, Cin))
# ---------------------------------------------------------------------------
def init_params(key, input_nc, ndf):
    k1, k2, k3, kb = jax.random.split(key, 4)
    w1 = 0.02 * jax.random.normal(k1, (ndf, input_nc), jnp.float32)
    b1 = 0.02 * jax.random.normal(kb, (ndf, 1), jnp.float32)
    w2 = 0.02 * jax.random.normal(k2, (2 * ndf, ndf), jnp.float32)
    gamma = jnp.ones((2 * ndf, 1), jnp.float32)   # BatchNorm2d default affine init
    beta = jnp.zeros((2 * ndf, 1), jnp.float32)
    w3 = 0.02 * jax.random.normal(k3, (2 * ndf, 1), jnp.float32)
    return w1, b1, w2, gamma, beta, w3


@jax.jit
def pixel_discriminator(x_nchw, w1, b1, w2, gamma, beta, w3):
    """NCHW in -> NCHW out (N, 1, H, W). Training-mode BatchNorm (batch statistics)."""
    N, C, H, W = x_nchw.shape
    HW = H * W
    P = N * HW
    ndf = w1.shape[0]
    ndf2 = w2.shape[0]

    # Free reshape: NCHW is already contiguous as (N, C, H*W). No transpose, no extra
    # HBM round trip. bf16 inputs would be a further v6e/v7x win; kept f32 here for
    # exact parity with the f32 reference.
    x = x_nchw.reshape(N, C, HW).astype(jnp.float32)

    tP = _pick_tile(HW)
    nT = HW // tP
    grid = (N, nT)

    x_spec = pl.BlockSpec((None, C, tP), lambda n, t: (n, 0, t))

    def _resident(shape):
        # small weight, fully resident, constant block index across the grid
        return pl.BlockSpec(shape, lambda n, t: (0,) * len(shape))

    cparams = pltpu.CompilerParams(
        dimension_semantics=("parallel", "parallel"),
        vmem_limit_bytes=32 * 1024 * 1024,
    )

    mm_flops = 2 * P * (C * ndf + ndf * ndf2)
    w_bytes = 4 * (ndf * C + ndf + ndf2 * ndf)

    # ---- pass 1: per-tile partial sum / sum-of-squares of h2 ----------------------
    part_sum, part_sumsq = pl.pallas_call(
        _stats_kernel,
        grid=grid,
        in_specs=[x_spec, _resident((ndf, C)), _resident((ndf, 1)),
                  _resident((ndf2, ndf))],
        out_shape=(
            jax.ShapeDtypeStruct((N, nT, ndf2, 1), jnp.float32),
            jax.ShapeDtypeStruct((N, nT, ndf2, 1), jnp.float32),
        ),
        out_specs=(
            pl.BlockSpec((None, None, ndf2, 1), lambda n, t: (n, t, 0, 0)),
            pl.BlockSpec((None, None, ndf2, 1), lambda n, t: (n, t, 0, 0)),
        ),
        compiler_params=cparams,
        cost_estimate=pl.CostEstimate(
            flops=mm_flops + 4 * P * ndf2,
            transcendentals=0,
            bytes_accessed=4 * (P * C + 2 * N * nT * ndf2) + w_bytes,
        ),
    )(x, w1, b1, w2)

    # ---- tiny XLA reduction: global BN stats over ALL N*H*W pixels ----------------
    mean = part_sum.sum(axis=(0, 1)) / P                       # (2*ndf, 1)
    var = part_sumsq.sum(axis=(0, 1)) / P - mean * mean        # biased var (PyTorch BN)
    inv_std = jax.lax.rsqrt(var + BN_EPS)
    scale = gamma * inv_std
    shift = beta - mean * scale
    w2_scaled = w2 * scale          # fold BN scale into the conv2 weights (per-out-channel)

    # ---- pass 2: recompute h2 with folded BN, LeakyReLU, final conv ---------------
    out = pl.pallas_call(
        _out_kernel,
        grid=grid,
        in_specs=[x_spec, _resident((ndf, C)), _resident((ndf, 1)),
                  _resident((ndf2, ndf)), _resident((ndf2, 1)), _resident((ndf2, 1))],
        out_shape=jax.ShapeDtypeStruct((N, 1, HW), jnp.float32),
        out_specs=pl.BlockSpec((None, 1, tP), lambda n, t: (n, 0, t)),
        compiler_params=cparams,
        cost_estimate=pl.CostEstimate(
            flops=mm_flops + 4 * P * ndf2,
            transcendentals=0,
            bytes_accessed=4 * (P * C + P + 3 * ndf2) + w_bytes,
        ),
    )(x, w1, b1, w2_scaled, shift, w3)

    return out.reshape(N, 1, H, W)


# ---------------------------------------------------------------------------
# Pure-JAX reference of the same forward pass (sanity check)
# ---------------------------------------------------------------------------
def _reference(x_nchw, w1, b1, w2, gamma, beta, w3):
    N, C, H, W = x_nchw.shape
    x = x_nchw.reshape(N, C, H * W).astype(jnp.float32)        # (N, C, HW)
    h1 = jnp.einsum("oc,ncp->nop", w1, x) + b1[None]
    h1 = jnp.where(h1 >= 0, h1, LEAK * h1)
    h2 = jnp.einsum("oc,ncp->nop", w2, h1)                     # (N, 2*ndf, HW)
    mean = h2.mean(axis=(0, 2), keepdims=True)
    var = ((h2 - mean) ** 2).mean(axis=(0, 2), keepdims=True)  # biased, training-mode BN
    h2 = (h2 - mean) / jnp.sqrt(var + BN_EPS) * gamma[None] + beta[None]
    h2 = jnp.where(h2 >= 0, h2, LEAK * h2)
    o = jnp.einsum("co,ncp->nop", w3, h2)                      # (N, 1, HW)
    return o.reshape(N, 1, H, W)


if __name__ == "__main__":
    # Small shapes consistent with the module's forward.
    N, Cin, H, W = 2, 4, 16, 16
    ndf = 32

    key = jax.random.PRNGKey(0)
    kx, kp = jax.random.split(key)
    x = jax.random.normal(kx, (N, Cin, H, W), jnp.float32)
    params = init_params(kp, Cin, ndf)

    out = pixel_discriminator(x, *params)
    out = jax.block_until_ready(out)

    assert out.shape == (N, 1, H, W), out.shape

    ref = _reference(x, *params)
    assert jnp.allclose(out, ref, atol=1e-4, rtol=1e-4), (
        float(jnp.max(jnp.abs(out - ref)))
    )

    print("KERNEL_OK")
</pallas_src>

<mosaic_0001>
module attributes {stable_mosaic.version = 11 : i64} {
  func.func @_stats_kernel(%arg0: i32, %arg1: i32, %arg2: memref<1x4x256xf32, #tpu.memory_space<vmem>>, %arg3: memref<32x4xf32, #tpu.memory_space<vmem>>, %arg4: memref<32x1xf32, #tpu.memory_space<vmem>>, %arg5: memref<64x32xf32, #tpu.memory_space<vmem>>, %arg6: memref<1x1x64x1xf32, #tpu.memory_space<vmem>>, %arg7: memref<1x1x64x1xf32, #tpu.memory_space<vmem>>) attributes {dimension_semantics = [#tpu.dimension_semantics<parallel>, #tpu.dimension_semantics<parallel>], iteration_bounds = array<i64: 2, 1>, scalar_prefetch = 0 : i64, scratch_operands = 0 : i64, tpu.core_type = #tpu.core_type<tc>, window_params = [{transform_indices = @transform_0, window_bounds = array<i64: 1, 4, 256>}, {pipeline_mode = #tpu.pipeline_mode<synchronous>, transform_indices = @transform_1, window_bounds = array<i64: 32, 4>}, {pipeline_mode = #tpu.pipeline_mode<synchronous>, transform_indices = @transform_2, window_bounds = array<i64: 32, 1>}, {pipeline_mode = #tpu.pipeline_mode<synchronous>, transform_indices = @transform_3, window_bounds = array<i64: 64, 32>}, {transform_indices = @transform_4, window_bounds = array<i64: 1, 1, 64, 1>}, {transform_indices = @transform_5, window_bounds = array<i64: 1, 1, 64, 1>}]} {
    %c0 = arith.constant 0 : index
    %c0_0 = arith.constant 0 : index
    %c0_1 = arith.constant 0 : index
    %0 = vector.load %arg2[%c0, %c0_0, %c0_1] : memref<1x4x256xf32, #tpu.memory_space<vmem>>, vector<1x4x256xf32>
    %1 = vector.shape_cast %0 : vector<1x4x256xf32> to vector<4x256xf32>
    %c0_2 = arith.constant 0 : index
    %c0_3 = arith.constant 0 : index
    %2 = vector.load %arg3[%c0_2, %c0_3] : memref<32x4xf32, #tpu.memory_space<vmem>>, vector<32x4xf32>
    %cst = arith.constant dense<0.000000e+00> : vector<32x256xf32>
    %3 = tpu.matmul %2, %1, %cst {dimension_numbers = #tpu.dot_dimension_numbers<[1], [0], [0], [1], [0, 0, 1, 1], [], []>} : vector<32x4xf32>, vector<4x256xf32>, vector<32x256xf32> -> vector<32x256xf32>
    %c0_4 = arith.constant 0 : index
    %c0_5 = arith.constant 0 : index
    %4 = vector.load %arg4[%c0_4, %c0_5] : memref<32x1xf32, #tpu.memory_space<vmem>>, vector<32x1xf32>
    %5 = vector.broadcast %4 : vector<32x1xf32> to vector<32x256xf32>
    %6 = arith.addf %3, %5 : vector<32x256xf32>
    %cst_6 = arith.constant 0.000000e+00 : f32
    %7 = vector.broadcast %cst_6 : f32 to vector<32x256xf32>
    %8 = arith.cmpf oge, %6, %7 : vector<32x256xf32>
    %cst_7 = arith.constant 2.000000e-01 : f32
    %9 = vector.broadcast %cst_7 : f32 to vector<32x256xf32>
    %10 = arith.mulf %9, %6 : vector<32x256xf32>
    %11 = arith.select %8, %6, %10 : vector<32x256xi1>, vector<32x256xf32>
    %c0_8 = arith.constant 0 : index
    %c0_9 = arith.constant 0 : index
    %12 = vector.load %arg5[%c0_8, %c0_9] : memref<64x32xf32, #tpu.memory_space<vmem>>, vector<64x32xf32>
    %cst_10 = arith.constant dense<0.000000e+00> : vector<64x256xf32>
    %13 = tpu.matmul %12, %11, %cst_10 {dimension_numbers = #tpu.dot_dimension_numbers<[1], [0], [0], [1], [0, 0, 1, 1], [], []>} : vector<64x32xf32>, vector<32x256xf32>, vector<64x256xf32> -> vector<64x256xf32>
    %cst_11 = arith.constant dense<0.000000e+00> : vector<64xf32>
    %14 = vector.multi_reduction <add>, %13, %cst_11 [1] : vector<64x256xf32> to vector<64xf32>
    %15 = vector.shape_cast %14 : vector<64xf32> to vector<64x1xf32>
    %c0_12 = arith.constant 0 : index
    %c0_13 = arith.constant 0 : index
    %c0_14 = arith.constant 0 : index
    %c0_15 = arith.constant 0 : index
    %16 = vector.load %arg6[%c0_12, %c0_13, %c0_14, %c0_15] : memref<1x1x64x1xf32, #tpu.memory_space<vmem>>, vector<1x1x64x1xf32>
    %17 = vector.shape_cast %16 : vector<1x1x64x1xf32> to vector<64x1xf32>
    %18 = vector.shape_cast %15 : vector<64x1xf32> to vector<1x1x64x1xf32>
    tpu.vector_store %arg6[%c0_12, %c0_13, %c0_14, %c0_15], %18 {strides = array<i32>} : memref<1x1x64x1xf32, #tpu.memory_space<vmem>>, vector<1x1x64x1xf32>,
    %19 = arith.mulf %13, %13 : vector<64x256xf32>
    %cst_16 = arith.constant dense<0.000000e+00> : vector<64xf32>
    %20 = vector.multi_reduction <add>, %19, %cst_16 [1] : vector<64x256xf32> to vector<64xf32>
    %21 = vector.shape_cast %20 : vector<64xf32> to vector<64x1xf32>
    %c0_17 = arith.constant 0 : index
    %c0_18 = arith.constant 0 : index
    %c0_19 = arith.constant 0 : index
    %c0_20 = arith.constant 0 : index
    %22 = vector.load %arg7[%c0_17, %c0_18, %c0_19, %c0_20] : memref<1x1x64x1xf32, #tpu.memory_space<vmem>>, vector<1x1x64x1xf32>
    %23 = vector.shape_cast %22 : vector<1x1x64x1xf32> to vector<64x1xf32>
    %24 = vector.shape_cast %21 : vector<64x1xf32> to vector<1x1x64x1xf32>
    tpu.vector_store %arg7[%c0_17, %c0_18, %c0_19, %c0_20], %24 {strides = array<i32>} : memref<1x1x64x1xf32, #tpu.memory_space<vmem>>, vector<1x1x64x1xf32>,
    return
  }
  func.func @transform_0(%arg0: i32, %arg1: i32) -> (i32, i32, i32) {
    %c0_i32 = arith.constant 0 : i32
    %c0_i32_0 = arith.constant 0 : i32
    return %arg0, %c0_i32, %arg1 : i32, i32, i32
  }
  func.func @transform_1(%arg0: i32, %arg1: i32) -> (i32, i32) {
    %c0_i32 = arith.constant 0 : i32
    %c0_i32_0 = arith.constant 0 : i32
    %c0_i32_1 = arith.constant 0 : i32
    return %c0_i32, %c0_i32_0 : i32, i32
  }
  func.func @transform_2(%arg0: i32, %arg1: i32) -> (i32, i32) {
    %c0_i32 = arith.constant 0 : i32
    %c0_i32_0 = arith.constant 0 : i32
    %c0_i32_1 = arith.constant 0 : i32
    return %c0_i32, %c0_i32_0 : i32, i32
  }
  func.func @transform_3(%arg0: i32, %arg1: i32) -> (i32, i32) {
    %c0_i32 = arith.constant 0 : i32
    %c0_i32_0 = arith.constant 0 : i32
    %c0_i32_1 = arith.constant 0 : i32
    return %c0_i32, %c0_i32_0 : i32, i32
  }
  func.func @transform_4(%arg0: i32, %arg1: i32) -> (i32, i32, i32, i32) {
    %c0_i32 = arith.constant 0 : i32
    %c0_i32_0 = arith.constant 0 : i32
    %c0_i32_1 = arith.constant 0 : i32
    return %arg0, %arg1, %c0_i32, %c0_i32_0 : i32, i32, i32, i32
  }
  func.func @transform_5(%arg0: i32, %arg1: i32) -> (i32, i32, i32, i32) {
    %c0_i32 = arith.constant 0 : i32
    %c0_i32_0 = arith.constant 0 : i32
    %c0_i32_1 = arith.constant 0 : i32
    return %arg0, %arg1, %c0_i32, %c0_i32_0 : i32, i32, i32, i32
  }
}

module attributes {stable_mosaic.version = 11 : i64} {
  func.func @_out_kernel(%arg0: i32, %arg1: i32, %arg2: memref<1x4x256xf32, #tpu.memory_space<vmem>>, %arg3: memref<32x4xf32, #tpu.memory_space<vmem>>, %arg4: memref<32x1xf32, #tpu.memory_space<vmem>>, %arg5: memref<64x32xf32, #tpu.memory_space<vmem>>, %arg6: memref<64x1xf32, #tpu.memory_space<vmem>>, %arg7: memref<64x1xf32, #tpu.memory_space<vmem>>, %arg8: memref<1x1x256xf32, #tpu.memory_space<vmem>>) attributes {dimension_semantics = [#tpu.dimension_semantics<parallel>, #tpu.dimension_semantics<parallel>], iteration_bounds = array<i64: 2, 1>, scalar_prefetch = 0 : i64, scratch_operands = 0 : i64, tpu.core_type = #tpu.core_type<tc>, window_params = [{transform_indices = @transform_0, window_bounds = array<i64: 1, 4, 256>}, {pipeline_mode = #tpu.pipeline_mode<synchronous>, transform_indices = @transform_1, window_bounds = array<i64: 32, 4>}, {pipeline_mode = #tpu.pipeline_mode<synchronous>, transform_indices = @transform_2, window_bounds = array<i64: 32, 1>}, {pipeline_mode = #tpu.pipeline_mode<synchronous>, transform_indices = @transform_3, window_bounds = array<i64: 64, 32>}, {pipeline_mode = #tpu.pipeline_mode<synchronous>, transform_indices = @transform_4, window_bounds = array<i64: 64, 1>}, {pipeline_mode = #tpu.pipeline_mode<synchronous>, transform_indices = @transform_5, window_bounds = array<i64: 64, 1>}, {transform_indices = @transform_6, window_bounds = array<i64: 1, 1, 256>}]} {
    %c0 = arith.constant 0 : index
    %c0_0 = arith.constant 0 : index
    %c0_1 = arith.constant 0 : index
    %0 = vector.load %arg2[%c0, %c0_0, %c0_1] : memref<1x4x256xf32, #tpu.memory_space<vmem>>, vector<1x4x256xf32>
    %1 = vector.shape_cast %0 : vector<1x4x256xf32> to vector<4x256xf32>
    %c0_2 = arith.constant 0 : index
    %c0_3 = arith.constant 0 : index
    %2 = vector.load %arg3[%c0_2, %c0_3] : memref<32x4xf32, #tpu.memory_space<vmem>>, vector<32x4xf32>
    %cst = arith.constant dense<0.000000e+00> : vector<32x256xf32>
    %3 = tpu.matmul %2, %1, %cst {dimension_numbers = #tpu.dot_dimension_numbers<[1], [0], [0], [1], [0, 0, 1, 1], [], []>} : vector<32x4xf32>, vector<4x256xf32>, vector<32x256xf32> -> vector<32x256xf32>
    %c0_4 = arith.constant 0 : index
    %c0_5 = arith.constant 0 : index
    %4 = vector.load %arg4[%c0_4, %c0_5] : memref<32x1xf32, #tpu.memory_space<vmem>>, vector<32x1xf32>
    %5 = vector.broadcast %4 : vector<32x1xf32> to vector<32x256xf32>
    %6 = arith.addf %3, %5 : vector<32x256xf32>
    %cst_6 = arith.constant 0.000000e+00 : f32
    %7 = vector.broadcast %cst_6 : f32 to vector<32x256xf32>
    %8 = arith.cmpf oge, %6, %7 : vector<32x256xf32>
    %cst_7 = arith.constant 2.000000e-01 : f32
    %9 = vector.broadcast %cst_7 : f32 to vector<32x256xf32>
    %10 = arith.mulf %9, %6 : vector<32x256xf32>
    %11 = arith.select %8, %6, %10 : vector<32x256xi1>, vector<32x256xf32>
    %c0_8 = arith.constant 0 : index
    %c0_9 = arith.constant 0 : index
    %12 = vector.load %arg5[%c0_8, %c0_9] : memref<64x32xf32, #tpu.memory_space<vmem>>, vector<64x32xf32>
    %cst_10 = arith.constant dense<0.000000e+00> : vector<64x256xf32>
    %13 = tpu.matmul %12, %11, %cst_10 {dimension_numbers = #tpu.dot_dimension_numbers<[1], [0], [0], [1], [0, 0, 1, 1], [], []>} : vector<64x32xf32>, vector<32x256xf32>, vector<64x256xf32> -> vector<64x256xf32>
    %c0_11 = arith.constant 0 : index
    %c0_12 = arith.constant 0 : index
    %14 = vector.load %arg6[%c0_11, %c0_12] : memref<64x1xf32, #tpu.memory_space<vmem>>, vector<64x1xf32>
    %15 = vector.broadcast %14 : vector<64x1xf32> to vector<64x256xf32>
    %16 = arith.addf %13, %15 : vector<64x256xf32>
    %cst_13 = arith.constant 0.000000e+00 : f32
    %17 = vector.broadcast %cst_13 : f32 to vector<64x256xf32>
    %18 = arith.cmpf oge, %16, %17 : vector<64x256xf32>
    %cst_14 = arith.constant 2.000000e-01 : f32
    %19 = vector.broadcast %cst_14 : f32 to vector<64x256xf32>
    %20 = arith.mulf %19, %16 : vector<64x256xf32>
    %21 = arith.select %18, %16, %20 : vector<64x256xi1>, vector<64x256xf32>
    %c0_15 = arith.constant 0 : index
    %c0_16 = arith.constant 0 : index
    %22 = vector.load %arg7[%c0_15, %c0_16] : memref<64x1xf32, #tpu.memory_space<vmem>>, vector<64x1xf32>
    %23 = vector.broadcast %22 : vector<64x1xf32> to vector<64x256xf32>
    %24 = arith.mulf %23, %21 : vector<64x256xf32>
    %cst_17 = arith.constant dense<0.000000e+00> : vector<256xf32>
    %25 = vector.multi_reduction <add>, %24, %cst_17 [0] : vector<64x256xf32> to vector<256xf32>
    %26 = vector.shape_cast %25 : vector<256xf32> to vector<1x256xf32>
    %c0_18 = arith.constant 0 : index
    %c0_19 = arith.constant 0 : index
    %c0_20 = arith.constant 0 : index
    %27 = vector.load %arg8[%c0_18, %c0_19, %c0_20] : memref<1x1x256xf32, #tpu.memory_space<vmem>>, vector<1x1x256xf32>
    %28 = vector.shape_cast %27 : vector<1x1x256xf32> to vector<1x256xf32>
    %29 = vector.shape_cast %26 : vector<1x256xf32> to vector<1x1x256xf32>
    tpu.vector_store %arg8[%c0_18, %c0_19, %c0_20], %29 {strides = array<i32>} : memref<1x1x256xf32, #tpu.memory_space<vmem>>, vector<1x1x256xf32>,
    return
  }
  func.func @transform_0(%arg0: i32, %arg1: i32) -> (i32, i32, i32) {
    %c0_i32 = arith.constant 0 : i32
    %c0_i32_0 = arith.constant 0 : i32
    return %arg0, %c0_i32, %arg1 : i32, i32, i32
  }
  func.func @transform_1(%arg0: i32, %arg1: i32) -> (i32, i32) {
    %c0_i32 = arith.constant 0 : i32
    %c0_i32_0 = arith.constant 0 : i32
    %c0_i32_1 = arith.constant 0 : i32
    return %c0_i32, %c0_i32_0 : i32, i32
  }
  func.func @transform_2(%arg0: i32, %arg1: i32) -> (i32, i32) {
    %c0_i32 = arith.constant 0 : i32
    %c0_i32_0 = arith.constant 0 : i32
    %c0_i32_1 = arith.constant 0 : i32
    return %c0_i32, %c0_i32_0 : i32, i32
  }
  func.func @transform_3(%arg0: i32, %arg1: i32) -> (i32, i32) {
    %c0_i32 = arith.constant 0 : i32
    %c0_i32_0 = arith.constant 0 : i32
    %c0_i32_1 = arith.constant 0 : i32
    return %c0_i32, %c0_i32_0 : i32, i32
  }
  func.func @transform_4(%arg0: i32, %arg1: i32) -> (i32, i32) {
    %c0_i32 = arith.constant 0 : i32
    %c0_i32_0 = arith.constant 0 : i32
    %c0_i32_1 = arith.constant 0 : i32
    return %c0_i32, %c0_i32_0 : i32, i32
  }
  func.func @transform_5(%arg0: i32, %arg1: i32) -> (i32, i32) {
    %c0_i32 = arith.constant 0 : i32
    %c0_i32_0 = arith.constant 0 : i32
    %c0_i32_1 = arith.constant 0 : i32
    return %c0_i32, %c0_i32_0 : i32, i32
  }
  func.func @transform_6(%arg0: i32, %arg1: i32) -> (i32, i32, i32) {
    %c0_i32 = arith.constant 0 : i32
    %c0_i32_0 = arith.constant 0 : i32
    return %arg0, %c0_i32, %arg1 : i32, i32, i32
  }
}

</mosaic_0001>

<llo_original>
// kernel: pixel_discriminator.2
$region0: #{pixel_discriminator.2}
  #allocation0 [shape = 'u32[]', space=smem, size = 0x4, offset = 0x4, fixed_abs, tag = 'smem constant byte address 0x4 - core index']
  #allocation1 [shape = 'u32[144,128]{1,0:T(1,128)}', space=vmem, size = 0x12000, scoped, tag = 'internal scratch']
  %s0 = inlined_call_operand.vmem [shape: f32[2,4,256], index: 0, kind: input, shape index: {}]
  %s1 = inlined_call_operand.vmem [shape: f32[32,4], index: 1, kind: input, shape index: {}]
  %s2 = inlined_call_operand.vmem [shape: f32[32,1], index: 2, kind: input, shape index: {}]
  %s3 = inlined_call_operand.vmem [shape: f32[64,32], index: 3, kind: input, shape index: {}]
  %s4 = inlined_call_operand.vmem [shape: f32[2,1,64,1], index: 4, kind: output, shape index: {0}]
  %s5 = inlined_call_operand.vmem [shape: f32[2,1,64,1], index: 5, kind: output, shape index: {1}]
  %6 = xla_tuple %s4, %s5
  %s7 = sld [smem:[#allocation0]]
  $region57: #{pixel_discriminator.2} parent=0
    _
  %s9 = ssub.s32 1, %s7
  %s10 = scalar_select 0, %s9, %s7
  loop: start=0, step=1, limit=4
  $region2: #{pixel_discriminator.2} parent=0 // loop_pre_header
    _
  $region3: #{pixel_discriminator.2} parent=0 // loop_header
    %s12 = sphi 0, %s16
    %p13 = scmp.ge.s32.totalorder %s12, 4
    %s19 = sphi 0, %s31
    %s20 = sphi 0, %s27
    %s21 = sphi 0, %s19
    %s22 = sphi 0, %s20
    %s23 = sphi 0, %s21
    %s24 = sphi 0, %s22
    %s36 = sphi 0, %s38
    %s39 = sphi 0, %s36
    %s40 = sphi 0, %s39
    %s56 = sphi 0, %s40
    %s60 = sphi 0, %s60
    %s62 = sphi 0, %s60
    %s63 = sphi 0, %s62
    %s77 = sphi 0, %s63
    %s81 = sphi 0, %s81
    %s83 = sphi 0, %s81
    %s84 = sphi 0, %s83
    %s98 = sphi 0, %s84
    %s102 = sphi 0, %s102
    %s104 = sphi 0, %s102
    %s105 = sphi 0, %s104
    %s119 = sphi 0, %s105
    %s127 = sphi 0, %s129
    %s130 = sphi 0, %s127
    %s131 = sphi 0, %s130
    %s147 = sphi 0, %s131
    %s155 = sphi 0, %s157
    %s158 = sphi 0, %s155
    %s159 = sphi 0, %s158
    %s175 = sphi 0, %s159
  $region4: #{pixel_discriminator.2} parent=0 // loop_header_branch
    %15 = sbr.rel (%p13) target = $region8
  $region5: #{pixel_discriminator.2} parent=0 // loop_body
    %s17 = ssub.s32 %s12, 1
    %s18 = ssub.s32 %s12, 2
    %s25 = sadd.s32 1, %s20
    %p26 = scmp.ge.s32.totalorder %s25, 1
    %s27 = scalar_select %p26, 0, %s25
    %s28 = sadd.s32 1, %s19
    %s29 = scalar_select %p26, %s28, %s19
    %p30 = scmp.ge.s32.totalorder %s29, 2
    %s31 = scalar_select %p30, 0, %s29
    %s32 = ssub.s32 %s19, %s31
    %s33 = ssub.s32 %s20, %s27
    %s34 = sor.u32 %s32, %s33
    %p35 = scmp.eq.s32.totalorder %s34, 0
    %s37 = sadd.s32 %s36, 1
    %s38 = scalar_select %p35, %s36, %s37
    %p41 = pneg %p35
    %p42 = scmp.eq.s32.totalorder %s12, 1
    %p43 = por %p41, %p42
    %p44 = scmp.ne.s32.totalorder %s36, %s39
    %p45 = scmp.eq.s32.totalorder %s12, 0
    %p46 = por %p44, %p45
    %p47 = scmp.ne.s32.totalorder %s36, %s39
    %p48 = scmp.eq.s32.totalorder %s17, 1
    %p49 = por %p47, %p48
    %p50 = scmp.ne.s32.totalorder %s39, %s40
    %p51 = scmp.eq.s32.totalorder %s17, 0
    %p52 = por %p50, %p51
    %p53 = scmp.ne.s32.totalorder %s39, %s40
    %p54 = scmp.eq.s32.totalorder %s18, 1
    %p55 = por %p53, %p54
    %p57 = scmp.ne.s32.totalorder %s40, %s56
    %p58 = scmp.eq.s32.totalorder %s18, 0
    %p59 = por %p57, %p58
    %s61 = sadd.s32 %s60, 1
    %p64 = scmp.eq.s32.totalorder %s12, 1
    %p65 = scmp.ne.s32.totalorder %s60, %s62
    %p66 = scmp.eq.s32.totalorder %s12, 0
    %p67 = por %p65, %p66
    %p68 = scmp.ne.s32.totalorder %s60, %s62
    %p69 = scmp.eq.s32.totalorder %s17, 1
    %p70 = por %p68, %p69
    %p71 = scmp.ne.s32.totalorder %s62, %s63
    %p72 = scmp.eq.s32.totalorder %s17, 0
    %p73 = por %p71, %p72
    %p74 = scmp.ne.s32.totalorder %s62, %s63
    %p75 = scmp.eq.s32.totalorder %s18, 1
    %p76 = por %p74, %p75
    %p78 = scmp.ne.s32.totalorder %s63, %s77
    %p79 = scmp.eq.s32.totalorder %s18, 0
    %p80 = por %p78, %p79
    %s82 = sadd.s32 %s81, 1
    %p85 = scmp.eq.s32.totalorder %s12, 1
    %p86 = scmp.ne.s32.totalorder %s81, %s83
    %p87 = scmp.eq.s32.totalorder %s12, 0
    %p88 = por %p86, %p87
    %p89 = scmp.ne.s32.totalorder %s81, %s83
    %p90 = scmp.eq.s32.totalorder %s17, 1
    %p91 = por %p89, %p90
    %p92 = scmp.ne.s32.totalorder %s83, %s84
    %p93 = scmp.eq.s32.totalorder %s17, 0
    %p94 = por %p92, %p93
    %p95 = scmp.ne.s32.totalorder %s83, %s84
    %p96 = scmp.eq.s32.totalorder %s18, 1
    %p97 = por %p95, %p96
    %p99 = scmp.ne.s32.totalorder %s84, %s98
    %p100 = scmp.eq.s32.totalorder %s18, 0
    %p101 = por %p99, %p100
    %s103 = sadd.s32 %s102, 1
    %p106 = scmp.eq.s32.totalorder %s12, 1
    %p107 = scmp.ne.s32.totalorder %s102, %s104
    %p108 = scmp.eq.s32.totalorder %s12, 0
    %p109 = por %p107, %p108
    %p110 = scmp.ne.s32.totalorder %s102, %s104
    %p111 = scmp.eq.s32.totalorder %s17, 1
    %p112 = por %p110, %p111
    %p113 = scmp.ne.s32.totalorder %s104, %s105
    %p114 = scmp.eq.s32.totalorder %s17, 0
    %p115 = por %p113, %p114
    %p116 = scmp.ne.s32.totalorder %s104, %s105
    %p117 = scmp.eq.s32.totalorder %s18, 1
    %p118 = por %p116, %p117
    %p120 = scmp.ne.s32.totalorder %s105, %s119
    %p121 = scmp.eq.s32.totalorder %s18, 0
    %p122 = por %p120, %p121
    %s123 = ssub.s32 %s19, %s31
    %s124 = ssub.s32 %s20, %s27
    %s125 = sor.u32 %s123, %s124
    %p126 = scmp.eq.s32.totalorder %s125, 0
    %s128 = sadd.s32 %s127, 1
    %s129 = scalar_select %p126, %s127, %s128
    %p132 = pneg %p126
    %p133 = scmp.eq.s32.totalorder %s12, 1
    %p134 = por %p132, %p133
    %p135 = scmp.ne.s32.totalorder %s127, %s130
    %p136 = scmp.eq.s32.totalorder %s12, 0
    %p137 = por %p135, %p136
    %p138 = scmp.ne.s32.totalorder %s127, %s130
    %p139 = scmp.eq.s32.totalorder %s17, 1
    %p140 = por %p138, %p139
    %p141 = scmp.ne.s32.totalorder %s130, %s131
    %p142 = scmp.eq.s32.totalorder %s17, 0
    %p143 = por %p141, %p142
    %p144 = scmp.ne.s32.totalorder %s130, %s131
    %p145 = scmp.eq.s32.totalorder %s18, 1
    %p146 = por %p144, %p145
    %p148 = scmp.ne.s32.totalorder %s131, %s147
    %p149 = scmp.eq.s32.totalorder %s18, 0
    %p150 = por %p148, %p149
    %s151 = ssub.s32 %s19, %s31
    %s152 = ssub.s32 %s20, %s27
    %s153 = sor.u32 %s151, %s152
    %p154 = scmp.eq.s32.totalorder %s153, 0
    %s156 = sadd.s32 %s155, 1
    %s157 = scalar_select %p154, %s155, %s156
    %p160 = pneg %p154
    %p161 = scmp.eq.s32.totalorder %s12, 1
    %p162 = por %p160, %p161
    %p163 = scmp.ne.s32.totalorder %s155, %s158
    %p164 = scmp.eq.s32.totalorder %s12, 0
    %p165 = por %p163, %p164
    %p166 = scmp.ne.s32.totalorder %s155, %s158
    %p167 = scmp.eq.s32.totalorder %s17, 1
    %p168 = por %p166, %p167
    %p169 = scmp.ne.s32.totalorder %s158, %s159
    %p170 = scmp.eq.s32.totalorder %s17, 0
    %p171 = por %p169, %p170
    %p172 = scmp.ne.s32.totalorder %s158, %s159
    %p173 = scmp.eq.s32.totalorder %s18, 1
    %p174 = por %p172, %p173
    %p176 = scmp.ne.s32.totalorder %s159, %s175
    %p177 = scmp.eq.s32.totalorder %s18, 0
    %p178 = por %p176, %p177
    %p179 = scmp.le.s32.totalorder 1, %s12
    %p180 = scmp.lt.s32.totalorder %s12, 3
    %p181 = pnand %p179, %p180
    %p182 = pneg %p181
    // Predicated region
    $region9: #{pixel_discriminator.2} parent=5 // pred_check
      _
    $region10: #{pixel_discriminator.2} parent=5 // pred_check_branch
      %184 = sbr.rel (%p181) target = $region12
    $region11: #{pixel_discriminator.2} parent=5 // pred_region
      %s185 = ssub.s32 %s12, 1
      // Predicated region
      $region13: #{pixel_discriminator.2} parent=11 // pred_check
        %p186 = pneg %p73
      $region14: #{pixel_discriminator.2} parent=11 // pred_check_branch
        %188 = sbr.rel (%p186) target = $region16
      $region15: #{pixel_discriminator.2} parent=11 // pred_region
        _
      $region16: #{pixel_discriminator.2} parent=11 // pred_fallthru
        _
      // Predicated region
      $region17: #{pixel_discriminator.2} parent=11 // pred_check
        %p189 = pneg %p94
      $region18: #{pixel_discriminator.2} parent=11 // pred_check_branch
        %191 = sbr.rel (%p189) target = $region20
      $region19: #{pixel_discriminator.2} parent=11 // pred_region
        _
      $region20: #{pixel_discriminator.2} parent=11 // pred_fallthru
        _
      // Predicated region
      $region21: #{pixel_discriminator.2} parent=11 // pred_check
        %p192 = pneg %p115
      $region22: #{pixel_discriminator.2} parent=11 // pred_check_branch
        %194 = sbr.rel (%p192) target = $region24
      $region23: #{pixel_discriminator.2} parent=11 // pred_region
        _
      $region24: #{pixel_discriminator.2} parent=11 // pred_fallthru
        _
    $region12: #{pixel_discriminator.2} parent=5 // pred_fallthru
      _
    %p195 = scmp.lt.s32.totalorder %s12, 2
    // Predicated region
    $region25: #{pixel_discriminator.2} parent=5 // pred_check
      %p196 = pneg %p195
    $region26: #{pixel_discriminator.2} parent=5 // pred_check_branch
      %198 = sbr.rel (%p196) target = $region28
    $region27: #{pixel_discriminator.2} parent=5 // pred_region
      // Predicated region
      $region29: #{pixel_discriminator.2} parent=27 // pred_check
        %p199 = pneg %p46
      $region30: #{pixel_discriminator.2} parent=27 // pred_check_branch
        %201 = sbr.rel (%p199) target = $region32
      $region31: #{pixel_discriminator.2} parent=27 // pred_region
        %s202 = smul.u32 2, %s20
        %p203 = scmp.lt.s32.totalorder %s19, 1
        %s204 = scalar_select %p203, %s19, 1
        %p205 = scmp.lt.s32.totalorder %s202, 1
        %s206 = scalar_select %p205, %s202, 1
        %s207 = smul.addr %s204, 2
        %s208 = sadd.s32 %s206, %s207
        %s209 = smul.addr %s208, 4
        %s210 = scalar_lea.vmem %s0, %s209
        %s211 = smul.u32 2, %s20
      $region32: #{pixel_discriminator.2} parent=27 // pred_fallthru
        _
    $region28: #{pixel_discriminator.2} parent=5 // pred_fallthru
      _
    %p212 = scmp.le.s32.totalorder 1, %s12
    %p213 = scmp.lt.s32.totalorder %s12, 3
    %p214 = pnand %p212, %p213
    %p215 = pneg %p214
    // Predicated region
    $region33: #{pixel_discriminator.2} parent=5 // pred_check
      _
    $region34: #{pixel_discriminator.2} parent=5 // pred_check_branch
      %217 = sbr.rel (%p214) target = $region36
    $region35: #{pixel_discriminator.2} parent=5 // pred_region
      %s218 = ssub.s32 %s12, 1
      %s219 = smul.u32 2, %s22
      %p220 = scmp.lt.s32.totalorder %s21, 1
      %s221 = scalar_select %p220, %s21, 1
      %p222 = scmp.lt.s32.totalorder %s219, 1
      %s223 = scalar_select %p222, %s219, 1
      %s224 = smul.addr %s221, 2
      %s225 = sadd.s32 %s223, %s224
      %s226 = smul.addr %s225, 4
      %s227 = scalar_lea.vmem %s0, %s226
      %p228 = pneg %p52
      %p229 = pneg %p49
      %p230 = pneg %p73
      %p231 = pneg %p70
      %p232 = pneg %p94
      %p233 = pneg %p91
      %p234 = pneg %p115
      %p235 = pneg %p112
      %p236 = pneg %p143
      %p237 = pneg %p140
      %p238 = scmp.lt.s32.totalorder %s21, 1
      %s239 = scalar_select %p238, %s21, 1
      %p240 = scmp.lt.s32.totalorder %s22, 0
      %s241 = scalar_select %p240, %s22, 0
      %s242 = smul.addr %s241, 8
      %s243 = smul.addr %s239, 8
      %s244 = sadd.s32 %s242, %s243
      %s245 = smul.addr %s244, 8
      %s246 = scalar_lea.vmem %s4, %s245
      %p247 = pneg %p171
      %p248 = pneg %p168
      %p249 = scmp.lt.s32.totalorder %s21, 1
      %s250 = scalar_select %p249, %s21, 1
      %p251 = scmp.lt.s32.totalorder %s22, 0
      %s252 = scalar_select %p251, %s22, 0
      %s253 = smul.addr %s252, 8
      %s254 = smul.addr %s250, 8
      %s255 = sadd.s32 %s253, %s254
      %s256 = smul.addr %s255, 8
      %s257 = scalar_lea.vmem %s5, %s256
      %s258 = smul.u32 2, %s22
      %p259 = scmp.lt.s32.totalorder %s21, 1
      %s260 = scalar_select %p259, %s21, 1
      %p261 = scmp.lt.s32.totalorder %s258, 1
      %s262 = scalar_select %p261, %s258, 1
      %s263 = smul.addr %s260, 2
      %s264 = sadd.s32 %s262, %s263
      %s265 = smul.addr %s264, 4
      %s266 = scalar_lea.vmem %s0, %s265
      %s267 = smul.u32 2, %s22
      %p268 = scmp.lt.s32.totalorder %s21, 1
      %s269 = scalar_select %p268, %s21, 1
      %p270 = scmp.lt.s32.totalorder %s22, 0
      %s271 = scalar_select %p270, %s22, 0
      %s272 = smul.addr %s271, 8
      %s273 = smul.addr %s269, 8
      %s274 = sadd.s32 %s272, %s273
      %s275 = smul.addr %s274, 8
      %s276 = scalar_lea.vmem %s4, %s275
      %p277 = scmp.lt.s32.totalorder %s21, 1
      %s278 = scalar_select %p277, %s21, 1
      %p279 = scmp.lt.s32.totalorder %s22, 0
      %s280 = scalar_select %p279, %s22, 0
      %s281 = smul.addr %s280, 8
      %s282 = smul.addr %s278, 8
      %s283 = sadd.s32 %s281, %s282
      %s284 = smul.addr %s283, 8
      %s285 = scalar_lea.vmem %s5, %s284
      %v286 = vld [vmem:[%s266] sm:$0xff]
      %v287 = vld [vmem:[%s1] sm:$0xff]
      %v288 = vld [vmem:[%s1 + $0x8] sm:$0xff]
      %v289 = vld [vmem:[%s1 + $0x10] sm:$0xff]
      %v290 = vld [vmem:[%s1 + $0x18] sm:$0xff]
      %v291 = vld [vmem:[%s2] sm:$0xff]
      %v292 = vld [vmem:[%s2 + $0x8] sm:$0xff]
      %v293 = vld [vmem:[%s2 + $0x10] sm:$0xff]
      %v294 = vld [vmem:[%s2 + $0x18] sm:$0xff]
      %296 = vset.pattern.permute.xlu0 0
      %297 = vperm.xlu0 %296, %v291
      %v298 = vpop.permute.xlu0 %297
      %301 = vset.pattern.permute.xlu0 0
      %302 = vperm.xlu0 %301, %v292
      %v303 = vpop.permute.xlu0 %302
      %306 = vset.pattern.permute.xlu0 0
      %307 = vperm.xlu0 %306, %v293
      %v308 = vpop.permute.xlu0 %307
      %311 = vset.pattern.permute.xlu0 0
      %312 = vperm.xlu0 %311, %v294
      %v313 = vpop.permute.xlu0 %312
      %v316 = vcombine.high %v286, %v286
      %vm317 = vcmask 31744
      %v319 = vsel %vm317, %v287, 0
      %v322 = vsel %vm317, %v288, 0
      %v325 = vsel %vm317, %v289, 0
      %v328 = vsel %vm317, %v290, 0
      %vm330 = vcmask 1043456
      %v331 = vsel %vm330, %v286, 0
      %v333 = vsel %vm330, %v316, 0
      %335 = vmatprep.subr.mxu0 0.0
      %336 = vmatpush1.msra.mxu0 0.0
      %337 = vmatprep.subr.mxu0 0.0
      %338 = vmatpush1.msra.mxu0 0.0
      %339 = vmatprep.subr.mxu0 0.0
      %340 = vmatpush1.msra.mxu0 0.0
      %341 = vmatprep.subr.mxu0 0.0
      %342 = vmatpush1.msra.mxu0 0.0
      %343 = vmatprep.subr.mxu0 0.0
      %344 = vmatpush1.msra.mxu0 0.0
      %345 = vmatprep.subr.mxu0 0.0
      %346 = vmatpush1.msra.mxu0 0.0
      %347 = vmatprep.subr.mxu0 0.0
      %348 = vmatpush1.msra.mxu0 0.0
      %349 = vmatprep.subr.mxu0 0.0
      %350 = vmatpush1.msra.mxu0 0.0
      %351 = vmatprep.subr.mxu0 0.0
      %352 = vmatpush1.msra.mxu0 0.0
      %353 = vmatprep.subr.mxu0 0.0
      %354 = vmatpush1.msra.mxu0 0.0
      %355 = vmatprep.subr.mxu0 0.0
      %356 = vmatpush1.msra.mxu0 0.0
      %357 = vmatprep.subr.mxu0 0.0
      %358 = vmatpush1.msra.mxu0 0.0
      %359 = vmatprep.subr.mxu0 0.0
      %360 = vmatpush1.msra.mxu0 0.0
      %361 = vmatprep.subr.mxu0 0.0
      %362 = vmatpush1.msra.mxu0 0.0
      %363 = vmatprep.subr.mxu0 0.0
      %364 = vmatpush1.msra.mxu0 0.0
      %365 = vmatprep.subr.mxu0 %v333
      %366 = vmatpush1.msra.mxu0 %v331
      %367 = vmatprep.subr.mxu0 0.0
      %368 = vmatpush2.msra.mxu0 0.0
      %369 = vmatprep.subr.mxu0 0.0
      %370 = vmatpush2.msra.mxu0 0.0
      %371 = vmatprep.subr.mxu0 0.0
      %372 = vmatpush2.msra.mxu0 0.0
      %373 = vmatprep.subr.mxu0 0.0
      %374 = vmatpush2.msra.mxu0 0.0
      %375 = vmatprep.subr.mxu0 0.0
      %376 = vmatpush2.msra.mxu0 0.0
      %377 = vmatprep.subr.mxu0 0.0
      %378 = vmatpush2.msra.mxu0 0.0
      %379 = vmatprep.subr.mxu0 0.0
      %380 = vmatpush2.msra.mxu0 0.0
      %381 = vmatprep.subr.mxu0 0.0
      %382 = vmatpush2.msra.mxu0 0.0
      %383 = vmatprep.subr.mxu0 0.0
      %384 = vmatpush2.msra.mxu0 0.0
      %385 = vmatprep.subr.mxu0 0.0
      %386 = vmatpush2.msra.mxu0 0.0
      %387 = vmatprep.subr.mxu0 0.0
      %388 = vmatpush2.msra.mxu0 0.0
      %389 = vmatprep.subr.mxu0 0.0
      %390 = vmatpush2.msra.mxu0 0.0
      %391 = vmatprep.subr.mxu0 0.0
      %392 = vmatpush2.msra.mxu0 0.0
      %393 = vmatprep.subr.mxu0 0.0
      %394 = vmatpush2.msra.mxu0 0.0
      %395 = vmatprep.subr.mxu0 0.0
      %396 = vmatpush2.msra.mxu0 0.0
      %397 = vmatprep.subr.mxu0 0.0
      %398 = vmatpush2.msra.mxu0 0.0
      %399 = vmatprep.mubr.f32.mxu0 0.0
      %400 = vmatmul.mubr.f32.gmra.mxu0 %v319
      %v401 = vpop.f32.mrf.mxu0
      %v402 = vadd.f32 %v298, %v401
      %v403 = vpop.f32.mrf.mxu0
      %v404 = vadd.f32 %v298, %v403
      %405 = vmatprep.mubr.f32.mxu0 0.0
      %406 = vmatmul.mubr.f32.gmra.mxu0 %v322
      %v407 = vpop.f32.mrf.mxu0
      %v408 = vadd.f32 %v303, %v407
      %v409 = vpop.f32.mrf.mxu0
      %v410 = vadd.f32 %v303, %v409
      %411 = vmatprep.mubr.f32.mxu0 0.0
      %412 = vmatmul.mubr.f32.gmra.mxu0 %v325
      %v413 = vpop.f32.mrf.mxu0
      %v414 = vadd.f32 %v308, %v413
      %v415 = vpop.f32.mrf.mxu0
      %v416 = vadd.f32 %v308, %v415
      %417 = vmatprep.mubr.f32.mxu0 0.0
      %418 = vmatmul.mubr.f32.gmra.mxu0 %v328
      %v419 = vpop.f32.mrf.mxu0
      %v420 = vadd.f32 %v313, %v419
      %v421 = vpop.f32.mrf.mxu0
      %v422 = vadd.f32 %v313, %v421
      %423 = vdwg.mxu0
      %vm424 = vcmp.ge.f32.partialorder %v402, 0.0
      %vm425 = vcmp.ge.f32.partialorder %v404, 0.0
      %vm426 = vcmp.ge.f32.partialorder %v408, 0.0
      %vm427 = vcmp.ge.f32.partialorder %v410, 0.0
      %vm428 = vcmp.ge.f32.partialorder %v414, 0.0
      %vm429 = vcmp.ge.f32.partialorder %v416, 0.0
      %vm430 = vcmp.ge.f32.partialorder %v420, 0.0
      %vm431 = vcmp.ge.f32.partialorder %v422, 0.0
      %v432 = vmul.f32 %v402, 0.2
      %v433 = vmul.f32 %v404, 0.2
      %v434 = vmul.f32 %v408, 0.2
      %v435 = vmul.f32 %v410, 0.2
      %v436 = vmul.f32 %v414, 0.2
      %v437 = vmul.f32 %v416, 0.2
      %v438 = vmul.f32 %v420, 0.2
      %v439 = vmul.f32 %v422, 0.2
      %v440 = vsel %vm424, %v402, %v432
      %v441 = vsel %vm425, %v404, %v433
      %v442 = vsel %vm426, %v408, %v434
      %v443 = vsel %vm427, %v410, %v435
      %v444 = vsel %vm428, %v414, %v436
      %v445 = vsel %vm429, %v416, %v437
      %v446 = vsel %vm430, %v420, %v438
      %v447 = vsel %vm431, %v422, %v439
      %v448 = vld [vmem:[%s3] sm:$0xff]
      %v449 = vld [vmem:[%s3 + $0x8] sm:$0xff]
      %v450 = vld [vmem:[%s3 + $0x10] sm:$0xff]
      %v451 = vld [vmem:[%s3 + $0x18] sm:$0xff]
      %v452 = vld [vmem:[%s3 + $0x20] sm:$0xff]
      %v453 = vld [vmem:[%s3 + $0x28] sm:$0xff]
      %v454 = vld [vmem:[%s3 + $0x30] sm:$0xff]
      %v455 = vld [vmem:[%s3 + $0x38] sm:$0xff]
      %vm456 = vcmask 261120
      %v458 = vsel %vm456, %v448, 0
      %v461 = vsel %vm456, %v449, 0
      %v464 = vsel %vm456, %v450, 0
      %v467 = vsel %vm456, %v451, 0
      %v470 = vsel %vm456, %v452, 0
      %v473 = vsel %vm456, %v453, 0
      %v476 = vsel %vm456, %v454, 0
      %v479 = vsel %vm456, %v455, 0
      %481 = vmatprep.subr.mxu0 0.0
      %482 = vmatpush1.msra.mxu0 0.0
      %483 = vmatprep.subr.mxu0 0.0
      %484 = vmatpush1.msra.mxu0 0.0
      %485 = vmatprep.subr.mxu0 0.0
      %486 = vmatpush1.msra.mxu0 0.0
      %487 = vmatprep.subr.mxu0 0.0
      %488 = vmatpush1.msra.mxu0 0.0
      %489 = vmatprep.subr.mxu0 0.0
      %490 = vmatpush1.msra.mxu0 0.0
      %491 = vmatprep.subr.mxu0 0.0
      %492 = vmatpush1.msra.mxu0 0.0
      %493 = vmatprep.subr.mxu0 0.0
      %494 = vmatpush1.msra.mxu0 0.0
      %495 = vmatprep.subr.mxu0 0.0
      %496 = vmatpush1.msra.mxu0 0.0
      %497 = vmatprep.subr.mxu0 0.0
      %498 = vmatpush1.msra.mxu0 0.0
      %499 = vmatprep.subr.mxu0 0.0
      %500 = vmatpush1.msra.mxu0 0.0
      %501 = vmatprep.subr.mxu0 0.0
      %502 = vmatpush1.msra.mxu0 0.0
      %503 = vmatprep.subr.mxu0 0.0
      %504 = vmatpush1.msra.mxu0 0.0
      %505 = vmatprep.subr.mxu0 %v447
      %506 = vmatpush1.msra.mxu0 %v446
      %507 = vmatprep.subr.mxu0 %v445
      %508 = vmatpush1.msra.mxu0 %v444
      %509 = vmatprep.subr.mxu0 %v443
      %510 = vmatpush1.msra.mxu0 %v442
      %511 = vmatprep.subr.mxu0 %v441
      %512 = vmatpush1.msra.mxu0 %v440
      %513 = vmatprep.subr.mxu0 0.0
      %514 = vmatpush2.msra.mxu0 0.0
      %515 = vmatprep.subr.mxu0 0.0
      %516 = vmatpush2.msra.mxu0 0.0
      %517 = vmatprep.subr.mxu0 0.0
      %518 = vmatpush2.msra.mxu0 0.0
      %519 = vmatprep.subr.mxu0 0.0
      %520 = vmatpush2.msra.mxu0 0.0
      %521 = vmatprep.subr.mxu0 0.0
      %522 = vmatpush2.msra.mxu0 0.0
      %523 = vmatprep.subr.mxu0 0.0
      %524 = vmatpush2.msra.mxu0 0.0
      %525 = vmatprep.subr.mxu0 0.0
      %526 = vmatpush2.msra.mxu0 0.0
      %527 = vmatprep.subr.mxu0 0.0
      %528 = vmatpush2.msra.mxu0 0.0
      %529 = vmatprep.subr.mxu0 0.0
      %530 = vmatpush2.msra.mxu0 0.0
      %531 = vmatprep.subr.mxu0 0.0
      %532 = vmatpush2.msra.mxu0 0.0
      %533 = vmatprep.subr.mxu0 0.0
      %534 = vmatpush2.msra.mxu0 0.0
      %535 = vmatprep.subr.mxu0 0.0
      %536 = vmatpush2.msra.mxu0 0.0
      %537 = vmatprep.subr.mxu0 0.0
      %538 = vmatpush2.msra.mxu0 0.0
      %539 = vmatprep.subr.mxu0 0.0
      %540 = vmatpush2.msra.mxu0 0.0
      %541 = vmatprep.subr.mxu0 0.0
      %542 = vmatpush2.msra.mxu0 0.0
      %543 = vmatprep.subr.mxu0 0.0
      %544 = vmatpush2.msra.mxu0 0.0
      %545 = vmatprep.mubr.f32.mxu0 0.0
      %546 = vmatmul.mubr.f32.gmra.mxu0 %v458
      %v547 = vpop.f32.mrf.mxu0
      %v548 = vadd.f32 0.0, %v547
      %v549 = vpop.f32.mrf.mxu0
      %v550 = vadd.f32 0.0, %v549
      %551 = vmatprep.mubr.f32.mxu0 0.0
      %552 = vmatmul.mubr.f32.gmra.mxu0 %v461
      %v553 = vpop.f32.mrf.mxu0
      %v554 = vadd.f32 0.0, %v553
      %v555 = vpop.f32.mrf.mxu0
      %v556 = vadd.f32 0.0, %v555
      %557 = vmatprep.mubr.f32.mxu0 0.0
      %558 = vmatmul.mubr.f32.gmra.mxu0 %v464
      %v559 = vpop.f32.mrf.mxu0
      %v560 = vadd.f32 0.0, %v559
      %v561 = vpop.f32.mrf.mxu0
      %v562 = vadd.f32 0.0, %v561
      %563 = vmatprep.mubr.f32.mxu0 0.0
      %564 = vmatmul.mubr.f32.gmra.mxu0 %v467
      %v565 = vpop.f32.mrf.mxu0
      %v566 = vadd.f32 0.0, %v565
      %v567 = vpop.f32.mrf.mxu0
      %v568 = vadd.f32 0.0, %v567
      %569 = vmatprep.mubr.f32.mxu0 0.0
      %570 = vmatmul.mubr.f32.gmra.mxu0 %v470
      %v571 = vpop.f32.mrf.mxu0
      %v572 = vadd.f32 0.0, %v571
      %v573 = vpop.f32.mrf.mxu0
      %v574 = vadd.f32 0.0, %v573
      %575 = vmatprep.mubr.f32.mxu0 0.0
      %576 = vmatmul.mubr.f32.gmra.mxu0 %v473
      %v577 = vpop.f32.mrf.mxu0
      %v578 = vadd.f32 0.0, %v577
      %v579 = vpop.f32.mrf.mxu0
      %v580 = vadd.f32 0.0, %v579
      %581 = vmatprep.mubr.f32.mxu0 0.0
      %582 = vmatmul.mubr.f32.gmra.mxu0 %v476
      %v583 = vpop.f32.mrf.mxu0
      %v584 = vadd.f32 0.0, %v583
      %v585 = vpop.f32.mrf.mxu0
      %v586 = vadd.f32 0.0, %v585
      %587 = vmatprep.mubr.f32.mxu0 0.0
      %588 = vmatmul.mubr.f32.gmra.mxu0 %v479
      %v589 = vpop.f32.mrf.mxu0
      %v590 = vadd.f32 0.0, %v589
      %v591 = vpop.f32.mrf.mxu0
      %v592 = vadd.f32 0.0, %v591
      %593 = vdwg.mxu0
      %v594 = vadd.f32 %v548, %v550
      %595 = vadd.xlane.f32.xlu0 %v594
      %v596 = vpop.xlane.xlu0 %595
      %v597 = vadd.f32 %v554, %v556
      %598 = vadd.xlane.f32.xlu0 %v597
      %v599 = vpop.xlane.xlu0 %598
      %v600 = vadd.f32 %v560, %v562
      %601 = vadd.xlane.f32.xlu0 %v600
      %v602 = vpop.xlane.xlu0 %601
      %v603 = vadd.f32 %v566, %v568
      %604 = vadd.xlane.f32.xlu0 %v603
      %v605 = vpop.xlane.xlu0 %604
      %v606 = vadd.f32 %v572, %v574
      %607 = vadd.xlane.f32.xlu0 %v606
      %v608 = vpop.xlane.xlu0 %607
      %v609 = vadd.f32 %v578, %v580
      %610 = vadd.xlane.f32.xlu0 %v609
      %v611 = vpop.xlane.xlu0 %610
      %v612 = vadd.f32 %v584, %v586
      %613 = vadd.xlane.f32.xlu0 %v612
      %v614 = vpop.xlane.xlu0 %613
      %v615 = vadd.f32 %v590, %v592
      %616 = vadd.xlane.f32.xlu0 %v615
      %v617 = vpop.xlane.xlu0 %616
      %vm618 = vcmask 7168
      %619 = vst.msk [vmem:[%s276] sm:$0xff] %vm618, %v596
      %620 = vst.msk [vmem:[%s276 + $0x8] sm:$0xff] %vm618, %v599
      %621 = vst.msk [vmem:[%s276 + $0x10] sm:$0xff] %vm618, %v602
      %622 = vst.msk [vmem:[%s276 + $0x18] sm:$0xff] %vm618, %v605
      %623 = vst.msk [vmem:[%s276 + $0x20] sm:$0xff] %vm618, %v608
      %624 = vst.msk [vmem:[%s276 + $0x28] sm:$0xff] %vm618, %v611
      %625 = vst.msk [vmem:[%s276 + $0x30] sm:$0xff] %vm618, %v614
      %626 = vst.msk [vmem:[%s276 + $0x38] sm:$0xff] %vm618, %v617
      %v627 = vmul.f32 %v548, %v548
      %v628 = vmul.f32 %v550, %v550
      %v629 = vmul.f32 %v554, %v554
      %v630 = vmul.f32 %v556, %v556
      %v631 = vmul.f32 %v560, %v560
      %v632 = vmul.f32 %v562, %v562
      %v633 = vmul.f32 %v566, %v566
      %v634 = vmul.f32 %v568, %v568
      %v635 = vmul.f32 %v572, %v572
      %v636 = vmul.f32 %v574, %v574
      %v637 = vmul.f32 %v578, %v578
      %v638 = vmul.f32 %v580, %v580
      %v639 = vmul.f32 %v584, %v584
      %v640 = vmul.f32 %v586, %v586
      %v641 = vmul.f32 %v590, %v590
      %v642 = vmul.f32 %v592, %v592
      %v643 = vadd.f32 %v627, %v628
      %644 = vadd.xlane.f32.xlu0 %v643
      %v645 = vpop.xlane.xlu0 %644
      %v646 = vadd.f32 %v629, %v630
      %647 = vadd.xlane.f32.xlu0 %v646
      %v648 = vpop.xlane.xlu0 %647
      %v649 = vadd.f32 %v631, %v632
      %650 = vadd.xlane.f32.xlu0 %v649
      %v651 = vpop.xlane.xlu0 %650
      %v652 = vadd.f32 %v633, %v634
      %653 = vadd.xlane.f32.xlu0 %v652
      %v654 = vpop.xlane.xlu0 %653
      %v655 = vadd.f32 %v635, %v636
      %656 = vadd.xlane.f32.xlu0 %v655
      %v657 = vpop.xlane.xlu0 %656
      %v658 = vadd.f32 %v637, %v638
      %659 = vadd.xlane.f32.xlu0 %v658
      %v660 = vpop.xlane.xlu0 %659
      %v661 = vadd.f32 %v639, %v640
      %662 = vadd.xlane.f32.xlu0 %v661
      %v663 = vpop.xlane.xlu0 %662
      %v664 = vadd.f32 %v641, %v642
      %665 = vadd.xlane.f32.xlu0 %v664
      %v666 = vpop.xlane.xlu0 %665
      %667 = vst.msk [vmem:[%s285] sm:$0xff] %vm618, %v645
      %668 = vst.msk [vmem:[%s285 + $0x8] sm:$0xff] %vm618, %v648
      %669 = vst.msk [vmem:[%s285 + $0x10] sm:$0xff] %vm618, %v651
      %670 = vst.msk [vmem:[%s285 + $0x18] sm:$0xff] %vm618, %v654
      %671 = vst.msk [vmem:[%s285 + $0x20] sm:$0xff] %vm618, %v657
      %672 = vst.msk [vmem:[%s285 + $0x28] sm:$0xff] %vm618, %v660
      %673 = vst.msk [vmem:[%s285 + $0x30] sm:$0xff] %vm618, %v663
      %674 = vst.msk [vmem:[%s285 + $0x38] sm:$0xff] %vm618, %v666
      %p675 = scmp.lt.s32.totalorder %s21, 1
      %s676 = scalar_select %p675, %s21, 1
      %p677 = scmp.lt.s32.totalorder %s22, 0
      %s678 = scalar_select %p677, %s22, 0
      %s679 = smul.addr %s678, 8
      %s680 = smul.addr %s676, 8
      %s681 = sadd.s32 %s679, %s680
      %s682 = smul.addr %s681, 8
      %s683 = scalar_lea.vmem %s4, %s682
      %p684 = scmp.lt.s32.totalorder %s21, 1
      %s685 = scalar_select %p684, %s21, 1
      %p686 = scmp.lt.s32.totalorder %s22, 0
      %s687 = scalar_select %p686, %s22, 0
      %s688 = smul.addr %s687, 8
      %s689 = smul.addr %s685, 8
      %s690 = sadd.s32 %s688, %s689
      %s691 = smul.addr %s690, 8
      %s692 = scalar_lea.vmem %s5, %s691
      // Predicated region
      $region37: #{pixel_discriminator.2} parent=35 // pred_check
        %p693 = pneg %p140
      $region38: #{pixel_discriminator.2} parent=35 // pred_check_branch
        %695 = sbr.rel (%p693) target = $region40
      $region39: #{pixel_discriminator.2} parent=35 // pred_region
        _
      $region40: #{pixel_discriminator.2} parent=35 // pred_fallthru
        _
      // Predicated region
      $region41: #{pixel_discriminator.2} parent=35 // pred_check
        %p696 = pneg %p168
      $region42: #{pixel_discriminator.2} parent=35 // pred_check_branch
        %698 = sbr.rel (%p696) target = $region44
      $region43: #{pixel_discriminator.2} parent=35 // pred_region
        _
      $region44: #{pixel_discriminator.2} parent=35 // pred_fallthru
        _
    $region36: #{pixel_discriminator.2} parent=5 // pred_fallthru
      _
    %p699 = scmp.le.s32.totalorder 2, %s12
    // Predicated region
    $region45: #{pixel_discriminator.2} parent=5 // pred_check
      %p700 = pneg %p699
    $region46: #{pixel_discriminator.2} parent=5 // pred_check_branch
      %702 = sbr.rel (%p700) target = $region48
    $region47: #{pixel_discriminator.2} parent=5 // pred_region
      %s703 = ssub.s32 %s12, 2
      // Predicated region
      $region49: #{pixel_discriminator.2} parent=47 // pred_check
        %p704 = pneg %p146
      $region50: #{pixel_discriminator.2} parent=47 // pred_check_branch
        %706 = sbr.rel (%p704) target = $region52
      $region51: #{pixel_discriminator.2} parent=47 // pred_region
        %p707 = scmp.lt.s32.totalorder %s23, 1
        %s708 = scalar_select %p707, %s23, 1
        %p709 = scmp.lt.s32.totalorder %s24, 0
        %s710 = scalar_select %p709, %s24, 0
        %s711 = smul.addr %s710, 8
        %s712 = smul.addr %s708, 8
        %s713 = sadd.s32 %s711, %s712
        %s714 = smul.addr %s713, 8
        %s715 = scalar_lea.vmem %s4, %s714
      $region52: #{pixel_discriminator.2} parent=47 // pred_fallthru
        _
      // Predicated region
      $region53: #{pixel_discriminator.2} parent=47 // pred_check
        %p716 = pneg %p174
      $region54: #{pixel_discriminator.2} parent=47 // pred_check_branch
        %718 = sbr.rel (%p716) target = $region56
      $region55: #{pixel_discriminator.2} parent=47 // pred_region
        %p719 = scmp.lt.s32.totalorder %s23, 1
        %s720 = scalar_select %p719, %s23, 1
        %p721 = scmp.lt.s32.totalorder %s24, 0
        %s722 = scalar_select %p721, %s24, 0
        %s723 = smul.addr %s722, 8
        %s724 = smul.addr %s720, 8
        %s725 = sadd.s32 %s723, %s724
        %s726 = smul.addr %s725, 8
        %s727 = scalar_lea.vmem %s5, %s726
      $region56: #{pixel_discriminator.2} parent=47 // pred_fallthru
        _
    $region48: #{pixel_discriminator.2} parent=5 // pred_fallthru
      _
  $region6: #{pixel_discriminator.2} parent=0 // loop_footer
    %s16 = sadd.s32 1, %s12
  $region7: #{pixel_discriminator.2} parent=0 // loop_footer_branch
    %11 = sbr.rel target = $region3
  $region8: #{pixel_discriminator.2} parent=0 // loop_exit
    _

// kernel: pixel_discriminator.3
$region0: #{pixel_discriminator.3}
  #allocation0 [shape = 'u32[]', space=smem, size = 0x4, offset = 0x4, fixed_abs, tag = 'smem constant byte address 0x4 - core index']
  #allocation1 [shape = 'u32[144,128]{1,0:T(1,128)}', space=vmem, size = 0x12000, scoped, tag = 'internal scratch']
  %s0 = inlined_call_operand.vmem [shape: f32[2,4,256], index: 0, kind: input, shape index: {}]
  %s1 = inlined_call_operand.vmem [shape: f32[32,4], index: 1, kind: input, shape index: {}]
  %s2 = inlined_call_operand.vmem [shape: f32[32,1], index: 2, kind: input, shape index: {}]
  %s3 = inlined_call_operand.vmem [shape: f32[64,32], index: 3, kind: input, shape index: {}]
  %s4 = inlined_call_operand.vmem [shape: f32[64,1], index: 4, kind: input, shape index: {}]
  %s5 = inlined_call_operand.vmem [shape: f32[64,1], index: 5, kind: input, shape index: {}]
  %s6 = inlined_call_operand.vmem [shape: f32[2,1,256], index: 6, kind: output, shape index: {}]
  %s7 = sld [smem:[#allocation0]]
  $region57: #{pixel_discriminator.3} parent=0
    _
  %s9 = ssub.s32 1, %s7
  %s10 = scalar_select 0, %s9, %s7
  loop: start=0, step=1, limit=4
  $region2: #{pixel_discriminator.3} parent=0 // loop_pre_header
    _
  $region3: #{pixel_discriminator.3} parent=0 // loop_header
    %s12 = sphi 0, %s16
    %p13 = scmp.ge.s32.totalorder %s12, 4
    %s19 = sphi 0, %s31
    %s20 = sphi 0, %s27
    %s21 = sphi 0, %s19
    %s22 = sphi 0, %s20
    %s23 = sphi 0, %s21
    %s24 = sphi 0, %s22
    %s36 = sphi 0, %s38
    %s39 = sphi 0, %s36
    %s40 = sphi 0, %s39
    %s56 = sphi 0, %s40
    %s60 = sphi 0, %s60
    %s62 = sphi 0, %s60
    %s63 = sphi 0, %s62
    %s77 = sphi 0, %s63
    %s81 = sphi 0, %s81
    %s83 = sphi 0, %s81
    %s84 = sphi 0, %s83
    %s98 = sphi 0, %s84
    %s102 = sphi 0, %s102
    %s104 = sphi 0, %s102
    %s105 = sphi 0, %s104
    %s119 = sphi 0, %s105
    %s123 = sphi 0, %s123
    %s125 = sphi 0, %s123
    %s126 = sphi 0, %s125
    %s140 = sphi 0, %s126
    %s144 = sphi 0, %s144
    %s146 = sphi 0, %s144
    %s147 = sphi 0, %s146
    %s161 = sphi 0, %s147
    %s169 = sphi 0, %s171
    %s172 = sphi 0, %s169
    %s173 = sphi 0, %s172
    %s189 = sphi 0, %s173
  $region4: #{pixel_discriminator.3} parent=0 // loop_header_branch
    %15 = sbr.rel (%p13) target = $region8
  $region5: #{pixel_discriminator.3} parent=0 // loop_body
    %s17 = ssub.s32 %s12, 1
    %s18 = ssub.s32 %s12, 2
    %s25 = sadd.s32 1, %s20
    %p26 = scmp.ge.s32.totalorder %s25, 1
    %s27 = scalar_select %p26, 0, %s25
    %s28 = sadd.s32 1, %s19
    %s29 = scalar_select %p26, %s28, %s19
    %p30 = scmp.ge.s32.totalorder %s29, 2
    %s31 = scalar_select %p30, 0, %s29
    %s32 = ssub.s32 %s19, %s31
    %s33 = ssub.s32 %s20, %s27
    %s34 = sor.u32 %s32, %s33
    %p35 = scmp.eq.s32.totalorder %s34, 0
    %s37 = sadd.s32 %s36, 1
    %s38 = scalar_select %p35, %s36, %s37
    %p41 = pneg %p35
    %p42 = scmp.eq.s32.totalorder %s12, 1
    %p43 = por %p41, %p42
    %p44 = scmp.ne.s32.totalorder %s36, %s39
    %p45 = scmp.eq.s32.totalorder %s12, 0
    %p46 = por %p44, %p45
    %p47 = scmp.ne.s32.totalorder %s36, %s39
    %p48 = scmp.eq.s32.totalorder %s17, 1
    %p49 = por %p47, %p48
    %p50 = scmp.ne.s32.totalorder %s39, %s40
    %p51 = scmp.eq.s32.totalorder %s17, 0
    %p52 = por %p50, %p51
    %p53 = scmp.ne.s32.totalorder %s39, %s40
    %p54 = scmp.eq.s32.totalorder %s18, 1
    %p55 = por %p53, %p54
    %p57 = scmp.ne.s32.totalorder %s40, %s56
    %p58 = scmp.eq.s32.totalorder %s18, 0
    %p59 = por %p57, %p58
    %s61 = sadd.s32 %s60, 1
    %p64 = scmp.eq.s32.totalorder %s12, 1
    %p65 = scmp.ne.s32.totalorder %s60, %s62
    %p66 = scmp.eq.s32.totalorder %s12, 0
    %p67 = por %p65, %p66
    %p68 = scmp.ne.s32.totalorder %s60, %s62
    %p69 = scmp.eq.s32.totalorder %s17, 1
    %p70 = por %p68, %p69
    %p71 = scmp.ne.s32.totalorder %s62, %s63
    %p72 = scmp.eq.s32.totalorder %s17, 0
    %p73 = por %p71, %p72
    %p74 = scmp.ne.s32.totalorder %s62, %s63
    %p75 = scmp.eq.s32.totalorder %s18, 1
    %p76 = por %p74, %p75
    %p78 = scmp.ne.s32.totalorder %s63, %s77
    %p79 = scmp.eq.s32.totalorder %s18, 0
    %p80 = por %p78, %p79
    %s82 = sadd.s32 %s81, 1
    %p85 = scmp.eq.s32.totalorder %s12, 1
    %p86 = scmp.ne.s32.totalorder %s81, %s83
    %p87 = scmp.eq.s32.totalorder %s12, 0
    %p88 = por %p86, %p87
    %p89 = scmp.ne.s32.totalorder %s81, %s83
    %p90 = scmp.eq.s32.totalorder %s17, 1
    %p91 = por %p89, %p90
    %p92 = scmp.ne.s32.totalorder %s83, %s84
    %p93 = scmp.eq.s32.totalorder %s17, 0
    %p94 = por %p92, %p93
    %p95 = scmp.ne.s32.totalorder %s83, %s84
    %p96 = scmp.eq.s32.totalorder %s18, 1
    %p97 = por %p95, %p96
    %p99 = scmp.ne.s32.totalorder %s84, %s98
    %p100 = scmp.eq.s32.totalorder %s18, 0
    %p101 = por %p99, %p100
    %s103 = sadd.s32 %s102, 1
    %p106 = scmp.eq.s32.totalorder %s12, 1
    %p107 = scmp.ne.s32.totalorder %s102, %s104
    %p108 = scmp.eq.s32.totalorder %s12, 0
    %p109 = por %p107, %p108
    %p110 = scmp.ne.s32.totalorder %s102, %s104
    %p111 = scmp.eq.s32.totalorder %s17, 1
    %p112 = por %p110, %p111
    %p113 = scmp.ne.s32.totalorder %s104, %s105
    %p114 = scmp.eq.s32.totalorder %s17, 0
    %p115 = por %p113, %p114
    %p116 = scmp.ne.s32.totalorder %s104, %s105
    %p117 = scmp.eq.s32.totalorder %s18, 1
    %p118 = por %p116, %p117
    %p120 = scmp.ne.s32.totalorder %s105, %s119
    %p121 = scmp.eq.s32.totalorder %s18, 0
    %p122 = por %p120, %p121
    %s124 = sadd.s32 %s123, 1
    %p127 = scmp.eq.s32.totalorder %s12, 1
    %p128 = scmp.ne.s32.totalorder %s123, %s125
    %p129 = scmp.eq.s32.totalorder %s12, 0
    %p130 = por %p128, %p129
    %p131 = scmp.ne.s32.totalorder %s123, %s125
    %p132 = scmp.eq.s32.totalorder %s17, 1
    %p133 = por %p131, %p132
    %p134 = scmp.ne.s32.totalorder %s125, %s126
    %p135 = scmp.eq.s32.totalorder %s17, 0
    %p136 = por %p134, %p135
    %p137 = scmp.ne.s32.totalorder %s125, %s126
    %p138 = scmp.eq.s32.totalorder %s18, 1
    %p139 = por %p137, %p138
    %p141 = scmp.ne.s32.totalorder %s126, %s140
    %p142 = scmp.eq.s32.totalorder %s18, 0
    %p143 = por %p141, %p142
    %s145 = sadd.s32 %s144, 1
    %p148 = scmp.eq.s32.totalorder %s12, 1
    %p149 = scmp.ne.s32.totalorder %s144, %s146
    %p150 = scmp.eq.s32.totalorder %s12, 0
    %p151 = por %p149, %p150
    %p152 = scmp.ne.s32.totalorder %s144, %s146
    %p153 = scmp.eq.s32.totalorder %s17, 1
    %p154 = por %p152, %p153
    %p155 = scmp.ne.s32.totalorder %s146, %s147
    %p156 = scmp.eq.s32.totalorder %s17, 0
    %p157 = por %p155, %p156
    %p158 = scmp.ne.s32.totalorder %s146, %s147
    %p159 = scmp.eq.s32.totalorder %s18, 1
    %p160 = por %p158, %p159
    %p162 = scmp.ne.s32.totalorder %s147, %s161
    %p163 = scmp.eq.s32.totalorder %s18, 0
    %p164 = por %p162, %p163
    %s165 = ssub.s32 %s19, %s31
    %s166 = ssub.s32 %s20, %s27
    %s167 = sor.u32 %s165, %s166
    %p168 = scmp.eq.s32.totalorder %s167, 0
    %s170 = sadd.s32 %s169, 1
    %s171 = scalar_select %p168, %s169, %s170
    %p174 = pneg %p168
    %p175 = scmp.eq.s32.totalorder %s12, 1
    %p176 = por %p174, %p175
    %p177 = scmp.ne.s32.totalorder %s169, %s172
    %p178 = scmp.eq.s32.totalorder %s12, 0
    %p179 = por %p177, %p178
    %p180 = scmp.ne.s32.totalorder %s169, %s172
    %p181 = scmp.eq.s32.totalorder %s17, 1
    %p182 = por %p180, %p181
    %p183 = scmp.ne.s32.totalorder %s172, %s173
    %p184 = scmp.eq.s32.totalorder %s17, 0
    %p185 = por %p183, %p184
    %p186 = scmp.ne.s32.totalorder %s172, %s173
    %p187 = scmp.eq.s32.totalorder %s18, 1
    %p188 = por %p186, %p187
    %p190 = scmp.ne.s32.totalorder %s173, %s189
    %p191 = scmp.eq.s32.totalorder %s18, 0
    %p192 = por %p190, %p191
    %p193 = scmp.le.s32.totalorder 1, %s12
    %p194 = scmp.lt.s32.totalorder %s12, 3
    %p195 = pnand %p193, %p194
    %p196 = pneg %p195
    // Predicated region
    $region9: #{pixel_discriminator.3} parent=5 // pred_check
      _
    $region10: #{pixel_discriminator.3} parent=5 // pred_check_branch
      %198 = sbr.rel (%p195) target = $region12
    $region11: #{pixel_discriminator.3} parent=5 // pred_region
      %s199 = ssub.s32 %s12, 1
      // Predicated region
      $region13: #{pixel_discriminator.3} parent=11 // pred_check
        %p200 = pneg %p73
      $region14: #{pixel_discriminator.3} parent=11 // pred_check_branch
        %202 = sbr.rel (%p200) target = $region16
      $region15: #{pixel_discriminator.3} parent=11 // pred_region
        _
      $region16: #{pixel_discriminator.3} parent=11 // pred_fallthru
        _
      // Predicated region
      $region17: #{pixel_discriminator.3} parent=11 // pred_check
        %p203 = pneg %p94
      $region18: #{pixel_discriminator.3} parent=11 // pred_check_branch
        %205 = sbr.rel (%p203) target = $region20
      $region19: #{pixel_discriminator.3} parent=11 // pred_region
        _
      $region20: #{pixel_discriminator.3} parent=11 // pred_fallthru
        _
      // Predicated region
      $region21: #{pixel_discriminator.3} parent=11 // pred_check
        %p206 = pneg %p115
      $region22: #{pixel_discriminator.3} parent=11 // pred_check_branch
        %208 = sbr.rel (%p206) target = $region24
      $region23: #{pixel_discriminator.3} parent=11 // pred_region
        _
      $region24: #{pixel_discriminator.3} parent=11 // pred_fallthru
        _
      // Predicated region
      $region25: #{pixel_discriminator.3} parent=11 // pred_check
        %p209 = pneg %p136
      $region26: #{pixel_discriminator.3} parent=11 // pred_check_branch
        %211 = sbr.rel (%p209) target = $region28
      $region27: #{pixel_discriminator.3} parent=11 // pred_region
        _
      $region28: #{pixel_discriminator.3} parent=11 // pred_fallthru
        _
      // Predicated region
      $region29: #{pixel_discriminator.3} parent=11 // pred_check
        %p212 = pneg %p157
      $region30: #{pixel_discriminator.3} parent=11 // pred_check_branch
        %214 = sbr.rel (%p212) target = $region32
      $region31: #{pixel_discriminator.3} parent=11 // pred_region
        _
      $region32: #{pixel_discriminator.3} parent=11 // pred_fallthru
        _
    $region12: #{pixel_discriminator.3} parent=5 // pred_fallthru
      _
    %p215 = scmp.lt.s32.totalorder %s12, 2
    // Predicated region
    $region33: #{pixel_discriminator.3} parent=5 // pred_check
      %p216 = pneg %p215
    $region34: #{pixel_discriminator.3} parent=5 // pred_check_branch
      %218 = sbr.rel (%p216) target = $region36
    $region35: #{pixel_discriminator.3} parent=5 // pred_region
      // Predicated region
      $region37: #{pixel_discriminator.3} parent=35 // pred_check
        %p219 = pneg %p46
      $region38: #{pixel_discriminator.3} parent=35 // pred_check_branch
        %221 = sbr.rel (%p219) target = $region40
      $region39: #{pixel_discriminator.3} parent=35 // pred_region
        %s222 = smul.u32 2, %s20
        %p223 = scmp.lt.s32.totalorder %s19, 1
        %s224 = scalar_select %p223, %s19, 1
        %p225 = scmp.lt.s32.totalorder %s222, 1
        %s226 = scalar_select %p225, %s222, 1
        %s227 = smul.addr %s224, 2
        %s228 = sadd.s32 %s226, %s227
        %s229 = smul.addr %s228, 4
        %s230 = scalar_lea.vmem %s0, %s229
        %s231 = smul.u32 2, %s20
      $region40: #{pixel_discriminator.3} parent=35 // pred_fallthru
        _
    $region36: #{pixel_discriminator.3} parent=5 // pred_fallthru
      _
    %p232 = scmp.le.s32.totalorder 1, %s12
    %p233 = scmp.lt.s32.totalorder %s12, 3
    %p234 = pnand %p232, %p233
    %p235 = pneg %p234
    // Predicated region
    $region41: #{pixel_discriminator.3} parent=5 // pred_check
      _
    $region42: #{pixel_discriminator.3} parent=5 // pred_check_branch
      %237 = sbr.rel (%p234) target = $region44
    $region43: #{pixel_discriminator.3} parent=5 // pred_region
      %s238 = ssub.s32 %s12, 1
      %s239 = smul.u32 2, %s22
      %p240 = scmp.lt.s32.totalorder %s21, 1
      %s241 = scalar_select %p240, %s21, 1
      %p242 = scmp.lt.s32.totalorder %s239, 1
      %s243 = scalar_select %p242, %s239, 1
      %s244 = smul.addr %s241, 2
      %s245 = sadd.s32 %s243, %s244
      %s246 = smul.addr %s245, 4
      %s247 = scalar_lea.vmem %s0, %s246
      %p248 = pneg %p52
      %p249 = pneg %p49
      %p250 = pneg %p73
      %p251 = pneg %p70
      %p252 = pneg %p94
      %p253 = pneg %p91
      %p254 = pneg %p115
      %p255 = pneg %p112
      %p256 = pneg %p136
      %p257 = pneg %p133
      %p258 = pneg %p157
      %p259 = pneg %p154
      %p260 = pneg %p185
      %p261 = pneg %p182
      %s262 = smul.u32 2, %s22
      %p263 = scmp.lt.s32.totalorder %s21, 1
      %s264 = scalar_select %p263, %s21, 1
      %p265 = scmp.lt.s32.totalorder %s262, 1
      %s266 = scalar_select %p265, %s262, 1
      %s267 = smul.addr %s264, 2
      %s268 = sadd.s32 %s266, %s267
      %s269 = scalar_lea.vmem %s6, %s268
      %s270 = smul.u32 2, %s22
      %p271 = scmp.lt.s32.totalorder %s21, 1
      %s272 = scalar_select %p271, %s21, 1
      %p273 = scmp.lt.s32.totalorder %s270, 1
      %s274 = scalar_select %p273, %s270, 1
      %s275 = smul.addr %s272, 2
      %s276 = sadd.s32 %s274, %s275
      %s277 = smul.addr %s276, 4
      %s278 = scalar_lea.vmem %s0, %s277
      %s279 = smul.u32 2, %s22
      %s280 = smul.u32 2, %s22
      %p281 = scmp.lt.s32.totalorder %s21, 1
      %s282 = scalar_select %p281, %s21, 1
      %p283 = scmp.lt.s32.totalorder %s280, 1
      %s284 = scalar_select %p283, %s280, 1
      %s285 = smul.addr %s282, 2
      %s286 = sadd.s32 %s284, %s285
      %s287 = scalar_lea.vmem %s6, %s286
      %s288 = smul.u32 2, %s22
      %v289 = vld [vmem:[%s278] sm:$0xff]
      %v290 = vld [vmem:[%s1] sm:$0xff]
      %v291 = vld [vmem:[%s1 + $0x8] sm:$0xff]
      %v292 = vld [vmem:[%s1 + $0x10] sm:$0xff]
      %v293 = vld [vmem:[%s1 + $0x18] sm:$0xff]
      %v294 = vld [vmem:[%s2] sm:$0xff]
      %v295 = vld [vmem:[%s2 + $0x8] sm:$0xff]
      %v296 = vld [vmem:[%s2 + $0x10] sm:$0xff]
      %v297 = vld [vmem:[%s2 + $0x18] sm:$0xff]
      %299 = vset.pattern.permute.xlu0 0
      %300 = vperm.xlu0 %299, %v294
      %v301 = vpop.permute.xlu0 %300
      %304 = vset.pattern.permute.xlu0 0
      %305 = vperm.xlu0 %304, %v295
      %v306 = vpop.permute.xlu0 %305
      %309 = vset.pattern.permute.xlu0 0
      %310 = vperm.xlu0 %309, %v296
      %v311 = vpop.permute.xlu0 %310
      %314 = vset.pattern.permute.xlu0 0
      %315 = vperm.xlu0 %314, %v297
      %v316 = vpop.permute.xlu0 %315
      %v319 = vcombine.high %v289, %v289
      %vm320 = vcmask 31744
      %v322 = vsel %vm320, %v290, 0
      %v325 = vsel %vm320, %v291, 0
      %v328 = vsel %vm320, %v292, 0
      %v331 = vsel %vm320, %v293, 0
      %vm333 = vcmask 1043456
      %v334 = vsel %vm333, %v289, 0
      %v336 = vsel %vm333, %v319, 0
      %338 = vmatprep.subr.mxu0 0.0
      %339 = vmatpush1.msra.mxu0 0.0
      %340 = vmatprep.subr.mxu0 0.0
      %341 = vmatpush1.msra.mxu0 0.0
      %342 = vmatprep.subr.mxu0 0.0
      %343 = vmatpush1.msra.mxu0 0.0
      %344 = vmatprep.subr.mxu0 0.0
      %345 = vmatpush1.msra.mxu0 0.0
      %346 = vmatprep.subr.mxu0 0.0
      %347 = vmatpush1.msra.mxu0 0.0
      %348 = vmatprep.subr.mxu0 0.0
      %349 = vmatpush1.msra.mxu0 0.0
      %350 = vmatprep.subr.mxu0 0.0
      %351 = vmatpush1.msra.mxu0 0.0
      %352 = vmatprep.subr.mxu0 0.0
      %353 = vmatpush1.msra.mxu0 0.0
      %354 = vmatprep.subr.mxu0 0.0
      %355 = vmatpush1.msra.mxu0 0.0
      %356 = vmatprep.subr.mxu0 0.0
      %357 = vmatpush1.msra.mxu0 0.0
      %358 = vmatprep.subr.mxu0 0.0
      %359 = vmatpush1.msra.mxu0 0.0
      %360 = vmatprep.subr.mxu0 0.0
      %361 = vmatpush1.msra.mxu0 0.0
      %362 = vmatprep.subr.mxu0 0.0
      %363 = vmatpush1.msra.mxu0 0.0
      %364 = vmatprep.subr.mxu0 0.0
      %365 = vmatpush1.msra.mxu0 0.0
      %366 = vmatprep.subr.mxu0 0.0
      %367 = vmatpush1.msra.mxu0 0.0
      %368 = vmatprep.subr.mxu0 %v336
      %369 = vmatpush1.msra.mxu0 %v334
      %370 = vmatprep.subr.mxu0 0.0
      %371 = vmatpush2.msra.mxu0 0.0
      %372 = vmatprep.subr.mxu0 0.0
      %373 = vmatpush2.msra.mxu0 0.0
      %374 = vmatprep.subr.mxu0 0.0
      %375 = vmatpush2.msra.mxu0 0.0
      %376 = vmatprep.subr.mxu0 0.0
      %377 = vmatpush2.msra.mxu0 0.0
      %378 = vmatprep.subr.mxu0 0.0
      %379 = vmatpush2.msra.mxu0 0.0
      %380 = vmatprep.subr.mxu0 0.0
      %381 = vmatpush2.msra.mxu0 0.0
      %382 = vmatprep.subr.mxu0 0.0
      %383 = vmatpush2.msra.mxu0 0.0
      %384 = vmatprep.subr.mxu0 0.0
      %385 = vmatpush2.msra.mxu0 0.0
      %386 = vmatprep.subr.mxu0 0.0
      %387 = vmatpush2.msra.mxu0 0.0
      %388 = vmatprep.subr.mxu0 0.0
      %389 = vmatpush2.msra.mxu0 0.0
      %390 = vmatprep.subr.mxu0 0.0
      %391 = vmatpush2.msra.mxu0 0.0
      %392 = vmatprep.subr.mxu0 0.0
      %393 = vmatpush2.msra.mxu0 0.0
      %394 = vmatprep.subr.mxu0 0.0
      %395 = vmatpush2.msra.mxu0 0.0
      %396 = vmatprep.subr.mxu0 0.0
      %397 = vmatpush2.msra.mxu0 0.0
      %398 = vmatprep.subr.mxu0 0.0
      %399 = vmatpush2.msra.mxu0 0.0
      %400 = vmatprep.subr.mxu0 0.0
      %401 = vmatpush2.msra.mxu0 0.0
      %402 = vmatprep.mubr.f32.mxu0 0.0
      %403 = vmatmul.mubr.f32.gmra.mxu0 %v322
      %v404 = vpop.f32.mrf.mxu0
      %v405 = vadd.f32 %v301, %v404
      %v406 = vpop.f32.mrf.mxu0
      %v407 = vadd.f32 %v301, %v406
      %408 = vmatprep.mubr.f32.mxu0 0.0
      %409 = vmatmul.mubr.f32.gmra.mxu0 %v325
      %v410 = vpop.f32.mrf.mxu0
      %v411 = vadd.f32 %v306, %v410
      %v412 = vpop.f32.mrf.mxu0
      %v413 = vadd.f32 %v306, %v412
      %414 = vmatprep.mubr.f32.mxu0 0.0
      %415 = vmatmul.mubr.f32.gmra.mxu0 %v328
      %v416 = vpop.f32.mrf.mxu0
      %v417 = vadd.f32 %v311, %v416
      %v418 = vpop.f32.mrf.mxu0
      %v419 = vadd.f32 %v311, %v418
      %420 = vmatprep.mubr.f32.mxu0 0.0
      %421 = vmatmul.mubr.f32.gmra.mxu0 %v331
      %v422 = vpop.f32.mrf.mxu0
      %v423 = vadd.f32 %v316, %v422
      %v424 = vpop.f32.mrf.mxu0
      %v425 = vadd.f32 %v316, %v424
      %426 = vdwg.mxu0
      %vm427 = vcmp.ge.f32.partialorder %v405, 0.0
      %vm428 = vcmp.ge.f32.partialorder %v407, 0.0
      %vm429 = vcmp.ge.f32.partialorder %v411, 0.0
      %vm430 = vcmp.ge.f32.partialorder %v413, 0.0
      %vm431 = vcmp.ge.f32.partialorder %v417, 0.0
      %vm432 = vcmp.ge.f32.partialorder %v419, 0.0
      %vm433 = vcmp.ge.f32.partialorder %v423, 0.0
      %vm434 = vcmp.ge.f32.partialorder %v425, 0.0
      %v435 = vmul.f32 %v405, 0.2
      %v436 = vmul.f32 %v407, 0.2
      %v437 = vmul.f32 %v411, 0.2
      %v438 = vmul.f32 %v413, 0.2
      %v439 = vmul.f32 %v417, 0.2
      %v440 = vmul.f32 %v419, 0.2
      %v441 = vmul.f32 %v423, 0.2
      %v442 = vmul.f32 %v425, 0.2
      %v443 = vsel %vm427, %v405, %v435
      %v444 = vsel %vm428, %v407, %v436
      %v445 = vsel %vm429, %v411, %v437
      %v446 = vsel %vm430, %v413, %v438
      %v447 = vsel %vm431, %v417, %v439
      %v448 = vsel %vm432, %v419, %v440
      %v449 = vsel %vm433, %v423, %v441
      %v450 = vsel %vm434, %v425, %v442
      %v451 = vld [vmem:[%s3] sm:$0xff]
      %v452 = vld [vmem:[%s3 + $0x8] sm:$0xff]
      %v453 = vld [vmem:[%s3 + $0x10] sm:$0xff]
      %v454 = vld [vmem:[%s3 + $0x18] sm:$0xff]
      %v455 = vld [vmem:[%s3 + $0x20] sm:$0xff]
      %v456 = vld [vmem:[%s3 + $0x28] sm:$0xff]
      %v457 = vld [vmem:[%s3 + $0x30] sm:$0xff]
      %v458 = vld [vmem:[%s3 + $0x38] sm:$0xff]
      %v459 = vld [vmem:[%s4] sm:$0xff]
      %v460 = vld [vmem:[%s4 + $0x8] sm:$0xff]
      %v461 = vld [vmem:[%s4 + $0x10] sm:$0xff]
      %v462 = vld [vmem:[%s4 + $0x18] sm:$0xff]
      %v463 = vld [vmem:[%s4 + $0x20] sm:$0xff]
      %v464 = vld [vmem:[%s4 + $0x28] sm:$0xff]
      %v465 = vld [vmem:[%s4 + $0x30] sm:$0xff]
      %v466 = vld [vmem:[%s4 + $0x38] sm:$0xff]
      %468 = vset.pattern.permute.xlu0 0
      %469 = vperm.xlu0 %468, %v459
      %v470 = vpop.permute.xlu0 %469
      %473 = vset.pattern.permute.xlu0 0
      %474 = vperm.xlu0 %473, %v460
      %v475 = vpop.permute.xlu0 %474
      %478 = vset.pattern.permute.xlu0 0
      %479 = vperm.xlu0 %478, %v461
      %v480 = vpop.permute.xlu0 %479
      %483 = vset.pattern.permute.xlu0 0
      %484 = vperm.xlu0 %483, %v462
      %v485 = vpop.permute.xlu0 %484
      %488 = vset.pattern.permute.xlu0 0
      %489 = vperm.xlu0 %488, %v463
      %v490 = vpop.permute.xlu0 %489
      %493 = vset.pattern.permute.xlu0 0
      %494 = vperm.xlu0 %493, %v464
      %v495 = vpop.permute.xlu0 %494
      %498 = vset.pattern.permute.xlu0 0
      %499 = vperm.xlu0 %498, %v465
      %v500 = vpop.permute.xlu0 %499
      %503 = vset.pattern.permute.xlu0 0
      %504 = vperm.xlu0 %503, %v466
      %v505 = vpop.permute.xlu0 %504
      %vm507 = vcmask 261120
      %v509 = vsel %vm507, %v451, 0
      %v512 = vsel %vm507, %v452, 0
      %v515 = vsel %vm507, %v453, 0
      %v518 = vsel %vm507, %v454, 0
      %v521 = vsel %vm507, %v455, 0
      %v524 = vsel %vm507, %v456, 0
      %v527 = vsel %vm507, %v457, 0
      %v530 = vsel %vm507, %v458, 0
      %532 = vmatprep.subr.mxu0 0.0
      %533 = vmatpush1.msra.mxu0 0.0
      %534 = vmatprep.subr.mxu0 0.0
      %535 = vmatpush1.msra.mxu0 0.0
      %536 = vmatprep.subr.mxu0 0.0
      %537 = vmatpush1.msra.mxu0 0.0
      %538 = vmatprep.subr.mxu0 0.0
      %539 = vmatpush1.msra.mxu0 0.0
      %540 = vmatprep.subr.mxu0 0.0
      %541 = vmatpush1.msra.mxu0 0.0
      %542 = vmatprep.subr.mxu0 0.0
      %543 = vmatpush1.msra.mxu0 0.0
      %544 = vmatprep.subr.mxu0 0.0
      %545 = vmatpush1.msra.mxu0 0.0
      %546 = vmatprep.subr.mxu0 0.0
      %547 = vmatpush1.msra.mxu0 0.0
      %548 = vmatprep.subr.mxu0 0.0
      %549 = vmatpush1.msra.mxu0 0.0
      %550 = vmatprep.subr.mxu0 0.0
      %551 = vmatpush1.msra.mxu0 0.0
      %552 = vmatprep.subr.mxu0 0.0
      %553 = vmatpush1.msra.mxu0 0.0
      %554 = vmatprep.subr.mxu0 0.0
      %555 = vmatpush1.msra.mxu0 0.0
      %556 = vmatprep.subr.mxu0 %v450
      %557 = vmatpush1.msra.mxu0 %v449
      %558 = vmatprep.subr.mxu0 %v448
      %559 = vmatpush1.msra.mxu0 %v447
      %560 = vmatprep.subr.mxu0 %v446
      %561 = vmatpush1.msra.mxu0 %v445
      %562 = vmatprep.subr.mxu0 %v444
      %563 = vmatpush1.msra.mxu0 %v443
      %564 = vmatprep.subr.mxu0 0.0
      %565 = vmatpush2.msra.mxu0 0.0
      %566 = vmatprep.subr.mxu0 0.0
      %567 = vmatpush2.msra.mxu0 0.0
      %568 = vmatprep.subr.mxu0 0.0
      %569 = vmatpush2.msra.mxu0 0.0
      %570 = vmatprep.subr.mxu0 0.0
      %571 = vmatpush2.msra.mxu0 0.0
      %572 = vmatprep.subr.mxu0 0.0
      %573 = vmatpush2.msra.mxu0 0.0
      %574 = vmatprep.subr.mxu0 0.0
      %575 = vmatpush2.msra.mxu0 0.0
      %576 = vmatprep.subr.mxu0 0.0
      %577 = vmatpush2.msra.mxu0 0.0
      %578 = vmatprep.subr.mxu0 0.0
      %579 = vmatpush2.msra.mxu0 0.0
      %580 = vmatprep.subr.mxu0 0.0
      %581 = vmatpush2.msra.mxu0 0.0
      %582 = vmatprep.subr.mxu0 0.0
      %583 = vmatpush2.msra.mxu0 0.0
      %584 = vmatprep.subr.mxu0 0.0
      %585 = vmatpush2.msra.mxu0 0.0
      %586 = vmatprep.subr.mxu0 0.0
      %587 = vmatpush2.msra.mxu0 0.0
      %588 = vmatprep.subr.mxu0 0.0
      %589 = vmatpush2.msra.mxu0 0.0
      %590 = vmatprep.subr.mxu0 0.0
      %591 = vmatpush2.msra.mxu0 0.0
      %592 = vmatprep.subr.mxu0 0.0
      %593 = vmatpush2.msra.mxu0 0.0
      %594 = vmatprep.subr.mxu0 0.0
      %595 = vmatpush2.msra.mxu0 0.0
      %596 = vmatprep.mubr.f32.mxu0 0.0
      %597 = vmatmul.mubr.f32.gmra.mxu0 %v509
      %v598 = vpop.f32.mrf.mxu0
      %v599 = vadd.f32 %v470, %v598
      %v600 = vpop.f32.mrf.mxu0
      %v601 = vadd.f32 %v470, %v600
      %602 = vmatprep.mubr.f32.mxu0 0.0
      %603 = vmatmul.mubr.f32.gmra.mxu0 %v512
      %v604 = vpop.f32.mrf.mxu0
      %v605 = vadd.f32 %v475, %v604
      %v606 = vpop.f32.mrf.mxu0
      %v607 = vadd.f32 %v475, %v606
      %608 = vmatprep.mubr.f32.mxu0 0.0
      %609 = vmatmul.mubr.f32.gmra.mxu0 %v515
      %v610 = vpop.f32.mrf.mxu0
      %v611 = vadd.f32 %v480, %v610
      %v612 = vpop.f32.mrf.mxu0
      %v613 = vadd.f32 %v480, %v612
      %614 = vmatprep.mubr.f32.mxu0 0.0
      %615 = vmatmul.mubr.f32.gmra.mxu0 %v518
      %v616 = vpop.f32.mrf.mxu0
      %v617 = vadd.f32 %v485, %v616
      %v618 = vpop.f32.mrf.mxu0
      %v619 = vadd.f32 %v485, %v618
      %620 = vmatprep.mubr.f32.mxu0 0.0
      %621 = vmatmul.mubr.f32.gmra.mxu0 %v521
      %v622 = vpop.f32.mrf.mxu0
      %v623 = vadd.f32 %v490, %v622
      %v624 = vpop.f32.mrf.mxu0
      %v625 = vadd.f32 %v490, %v624
      %626 = vmatprep.mubr.f32.mxu0 0.0
      %627 = vmatmul.mubr.f32.gmra.mxu0 %v524
      %v628 = vpop.f32.mrf.mxu0
      %v629 = vadd.f32 %v495, %v628
      %v630 = vpop.f32.mrf.mxu0
      %v631 = vadd.f32 %v495, %v630
      %632 = vmatprep.mubr.f32.mxu0 0.0
      %633 = vmatmul.mubr.f32.gmra.mxu0 %v527
      %v634 = vpop.f32.mrf.mxu0
      %v635 = vadd.f32 %v500, %v634
      %v636 = vpop.f32.mrf.mxu0
      %v637 = vadd.f32 %v500, %v636
      %638 = vmatprep.mubr.f32.mxu0 0.0
      %639 = vmatmul.mubr.f32.gmra.mxu0 %v530
      %v640 = vpop.f32.mrf.mxu0
      %v641 = vadd.f32 %v505, %v640
      %v642 = vpop.f32.mrf.mxu0
      %v643 = vadd.f32 %v505, %v642
      %644 = vdwg.mxu0
      %vm645 = vcmp.ge.f32.partialorder %v599, 0.0
      %vm646 = vcmp.ge.f32.partialorder %v601, 0.0
      %vm647 = vcmp.ge.f32.partialorder %v605, 0.0
      %vm648 = vcmp.ge.f32.partialorder %v607, 0.0
      %vm649 = vcmp.ge.f32.partialorder %v611, 0.0
      %vm650 = vcmp.ge.f32.partialorder %v613, 0.0
      %vm651 = vcmp.ge.f32.partialorder %v617, 0.0
      %vm652 = vcmp.ge.f32.partialorder %v619, 0.0
      %vm653 = vcmp.ge.f32.partialorder %v623, 0.0
      %vm654 = vcmp.ge.f32.partialorder %v625, 0.0
      %vm655 = vcmp.ge.f32.partialorder %v629, 0.0
      %vm656 = vcmp.ge.f32.partialorder %v631, 0.0
      %vm657 = vcmp.ge.f32.partialorder %v635, 0.0
      %vm658 = vcmp.ge.f32.partialorder %v637, 0.0
      %vm659 = vcmp.ge.f32.partialorder %v641, 0.0
      %vm660 = vcmp.ge.f32.partialorder %v643, 0.0
      %v661 = vmul.f32 %v599, 0.2
      %v662 = vmul.f32 %v601, 0.2
      %v663 = vmul.f32 %v605, 0.2
      %v664 = vmul.f32 %v607, 0.2
      %v665 = vmul.f32 %v611, 0.2
      %v666 = vmul.f32 %v613, 0.2
      %v667 = vmul.f32 %v617, 0.2
      %v668 = vmul.f32 %v619, 0.2
      %v669 = vmul.f32 %v623, 0.2
      %v670 = vmul.f32 %v625, 0.2
      %v671 = vmul.f32 %v629, 0.2
      %v672 = vmul.f32 %v631, 0.2
      %v673 = vmul.f32 %v635, 0.2
      %v674 = vmul.f32 %v637, 0.2
      %v675 = vmul.f32 %v641, 0.2
      %v676 = vmul.f32 %v643, 0.2
      %v677 = vsel %vm645, %v599, %v661
      %v678 = vsel %vm646, %v601, %v662
      %v679 = vsel %vm647, %v605, %v663
      %v680 = vsel %vm648, %v607, %v664
      %v681 = vsel %vm649, %v611, %v665
      %v682 = vsel %vm650, %v613, %v666
      %v683 = vsel %vm651, %v617, %v667
      %v684 = vsel %vm652, %v619, %v668
      %v685 = vsel %vm653, %v623, %v669
      %v686 = vsel %vm654, %v625, %v670
      %v687 = vsel %vm655, %v629, %v671
      %v688 = vsel %vm656, %v631, %v672
      %v689 = vsel %vm657, %v635, %v673
      %v690 = vsel %vm658, %v637, %v674
      %v691 = vsel %vm659, %v641, %v675
      %v692 = vsel %vm660, %v643, %v676
      %v693 = vld [vmem:[%s5] sm:$0xff]
      %v694 = vld [vmem:[%s5 + $0x8] sm:$0xff]
      %v695 = vld [vmem:[%s5 + $0x10] sm:$0xff]
      %v696 = vld [vmem:[%s5 + $0x18] sm:$0xff]
      %v697 = vld [vmem:[%s5 + $0x20] sm:$0xff]
      %v698 = vld [vmem:[%s5 + $0x28] sm:$0xff]
      %v699 = vld [vmem:[%s5 + $0x30] sm:$0xff]
      %v700 = vld [vmem:[%s5 + $0x38] sm:$0xff]
      %702 = vset.pattern.permute.xlu0 0
      %703 = vperm.xlu0 %702, %v693
      %v704 = vpop.permute.xlu0 %703
      %707 = vset.pattern.permute.xlu0 0
      %708 = vperm.xlu0 %707, %v694
      %v709 = vpop.permute.xlu0 %708
      %712 = vset.pattern.permute.xlu0 0
      %713 = vperm.xlu0 %712, %v695
      %v714 = vpop.permute.xlu0 %713
      %717 = vset.pattern.permute.xlu0 0
      %718 = vperm.xlu0 %717, %v696
      %v719 = vpop.permute.xlu0 %718
      %722 = vset.pattern.permute.xlu0 0
      %723 = vperm.xlu0 %722, %v697
      %v724 = vpop.permute.xlu0 %723
      %727 = vset.pattern.permute.xlu0 0
      %728 = vperm.xlu0 %727, %v698
      %v729 = vpop.permute.xlu0 %728
      %732 = vset.pattern.permute.xlu0 0
      %733 = vperm.xlu0 %732, %v699
      %v734 = vpop.permute.xlu0 %733
      %737 = vset.pattern.permute.xlu0 0
      %738 = vperm.xlu0 %737, %v700
      %v739 = vpop.permute.xlu0 %738
      %v741 = vmul.f32 %v704, %v677
      %v742 = vmul.f32 %v704, %v678
      %v743 = vmul.f32 %v709, %v679
      %v744 = vmul.f32 %v709, %v680
      %v745 = vmul.f32 %v714, %v681
      %v746 = vmul.f32 %v714, %v682
      %v747 = vmul.f32 %v719, %v683
      %v748 = vmul.f32 %v719, %v684
      %v749 = vmul.f32 %v724, %v685
      %v750 = vmul.f32 %v724, %v686
      %v751 = vmul.f32 %v729, %v687
      %v752 = vmul.f32 %v729, %v688
      %v753 = vmul.f32 %v734, %v689
      %v754 = vmul.f32 %v734, %v690
      %v755 = vmul.f32 %v739, %v691
      %v756 = vmul.f32 %v739, %v692
      %v757 = vadd.f32 %v741, %v743
      %v758 = vadd.f32 %v757, %v745
      %v759 = vadd.f32 %v758, %v747
      %v760 = vadd.f32 %v759, %v749
      %v761 = vadd.f32 %v760, %v751
      %v762 = vadd.f32 %v761, %v753
      %v763 = vadd.f32 %v762, %v755
      %v764 = vrot.slane %v763, 4
      %v765 = vadd.f32 %v763, %v764
      %v766 = vrot.slane %v765, 2
      %v767 = vadd.f32 %v765, %v766
      %v768 = vrot.slane %v767, 1
      %v769 = vadd.f32 %v767, %v768
      %v770 = vadd.f32 %v742, %v744
      %v771 = vadd.f32 %v770, %v746
      %v772 = vadd.f32 %v771, %v748
      %v773 = vadd.f32 %v772, %v750
      %v774 = vadd.f32 %v773, %v752
      %v775 = vadd.f32 %v774, %v754
      %v776 = vadd.f32 %v775, %v756
      %v777 = vrot.slane %v776, 4
      %v778 = vadd.f32 %v776, %v777
      %v779 = vrot.slane %v778, 2
      %v780 = vadd.f32 %v778, %v779
      %v781 = vrot.slane %v780, 1
      %v782 = vadd.f32 %v780, %v781
      %v785 = vcombine.low %v769, %v782
      %v787 = vunpack.c.l.s4 1966171168
      %v788 = vunpack.c.0.s8 %v787
      %v789 = vlaneseq
      %v790 = vshrl.u32 %v789, 7
      %v791 = vsub.s32 %v788, %v790
      %v792 = vrot.slane %v785, %v791
      %v794 = vunpack.c.l.s4 1966171168
      %v795 = vunpack.c.0.s8 %v794
      %v796 = vlaneseq
      %v797 = vshrl.u32 %v796, 7
      %v798 = vsub.s32 %v795, %v797
      %v799 = vrot.slane %v792, %v798
      %v801 = vlaneseq
      %vm802 = vcmp.ge.s32.totalorder %v801, 0
      %vm803 = vcmp.lt.s32.totalorder %v801, 256
      %vm804 = vmand %vm802, %vm803
      %805 = vst.msk [vmem:[%s287] sm:$0x3] %vm804, %v799
      %s806 = smul.u32 2, %s22
      %p807 = scmp.lt.s32.totalorder %s21, 1
      %s808 = scalar_select %p807, %s21, 1
      %p809 = scmp.lt.s32.totalorder %s806, 1
      %s810 = scalar_select %p809, %s806, 1
      %s811 = smul.addr %s808, 2
      %s812 = sadd.s32 %s810, %s811
      %s813 = scalar_lea.vmem %s6, %s812
      // Predicated region
      $region45: #{pixel_discriminator.3} parent=43 // pred_check
        %p814 = pneg %p182
      $region46: #{pixel_discriminator.3} parent=43 // pred_check_branch
        %816 = sbr.rel (%p814) target = $region48
      $region47: #{pixel_discriminator.3} parent=43 // pred_region
        %s817 = smul.u32 2, %s22
      $region48: #{pixel_discriminator.3} parent=43 // pred_fallthru
        _
    $region44: #{pixel_discriminator.3} parent=5 // pred_fallthru
      _
    %p818 = scmp.le.s32.totalorder 2, %s12
    // Predicated region
    $region49: #{pixel_discriminator.3} parent=5 // pred_check
      %p819 = pneg %p818
    $region50: #{pixel_discriminator.3} parent=5 // pred_check_branch
      %821 = sbr.rel (%p819) target = $region52
    $region51: #{pixel_discriminator.3} parent=5 // pred_region
      %s822 = ssub.s32 %s12, 2
      // Predicated region
      $region53: #{pixel_discriminator.3} parent=51 // pred_check
        %p823 = pneg %p188
      $region54: #{pixel_discriminator.3} parent=51 // pred_check_branch
        %825 = sbr.rel (%p823) target = $region56
      $region55: #{pixel_discriminator.3} parent=51 // pred_region
        %s826 = smul.u32 2, %s24
        %p827 = scmp.lt.s32.totalorder %s23, 1
        %s828 = scalar_select %p827, %s23, 1
        %p829 = scmp.lt.s32.totalorder %s826, 1
        %s830 = scalar_select %p829, %s826, 1
        %s831 = smul.addr %s828, 2
        %s832 = sadd.s32 %s830, %s831
        %s833 = scalar_lea.vmem %s6, %s832
      $region56: #{pixel_discriminator.3} parent=51 // pred_fallthru
        _
    $region52: #{pixel_discriminator.3} parent=5 // pred_fallthru
      _
  $region6: #{pixel_discriminator.3} parent=0 // loop_footer
    %s16 = sadd.s32 1, %s12
  $region7: #{pixel_discriminator.3} parent=0 // loop_footer_branch
    %11 = sbr.rel target = $region3
  $region8: #{pixel_discriminator.3} parent=0 // loop_exit
    _

</llo_original>
